<compile_context>
chip_gen: v6e
topology: v6e:2x2x1
jax: 0.10.0
libtpu: 0.0.40
codegen_flags: <defaults>
</compile_context>

<pallas_src>
import jax
import jax.numpy as jnp
from jax.experimental import pallas as pl
from jax.experimental.pallas import tpu as pltpu

LANES = 128   # lane-dense width (one vreg row)
KSIZE = 3     # 3x3 conv


def _conv3x3_kernel(x_ref, w_ref, b_ref, o_ref):
    """3x3 'same' conv, shift-and-add on the VPU, taps via XLU rolls.

    x_ref: (Nb, Cin, HP, 128)  VMEM  row 0 = top conv pad, rows 1..H = data,
                                     rows H+1.. = zeros; lanes 0..W-1 = data,
                                     lanes W..127 = zeros.
    w_ref: (Cout*Cin*9,)       SMEM  flat conv weights (scalar reads).
    b_ref: (Cout,)             SMEM  conv bias (scalar reads).
    o_ref: (Nb, Cout, H, 128)  VMEM  lane-dense output (cols >= W are junk,
                                     sliced off / ignored by the wrapper).
    """
    Nb, Cin, HP, _ = x_ref.shape
    _, Cout, H, _ = o_ref.shape

    # Bias folded into the accumulator init: one (H,128) f32 acc per (n, co).
    accs = [[jnp.full((H, LANES), b_ref[co], jnp.float32)
             for co in range(Cout)] for n in range(Nb)]

    for ci in range(Cin):
        # One aligned (HP,128) slab load per (n, ci); every 3x3 tap below is a
        # roll of this slab (XLU slot, which has slack), not a fresh load.
        slabs = [x_ref[n, ci] for n in range(Nb)]
        for kh in range(KSIZE):
            # Sublane shift: rows[h] = slab[h + kh]  (h + kh <= H + 1 < HP, so
            # no wraparound reaches a valid output row).
            if kh == 0:
                rows = [s[:H, :] for s in slabs]
            else:
                rows = [pltpu.roll(s, HP - kh, axis=0)[:H, :] for s in slabs]
            for kw in range(KSIZE):
                d = kw - 1  # lane offset of this tap
                if d == 0:
                    patches = rows
                else:
                    # Lane shift: patch[w] = row[w + d].  The wrapped lane is
                    # either the zero column 127 (left tap) or lands in a junk
                    # column >= W (right tap), so no masking for W <= 126.
                    patches = [pltpu.roll(r, (-d) % LANES, axis=1)
                               for r in rows]
                for co in range(Cout):
                    # Scalar tap read once, shared across the whole batch.
                    tap = w_ref[(co * Cin + ci) * (KSIZE * KSIZE)
                                + kh * KSIZE + kw]
                    for n in range(Nb):
                        accs[n][co] = accs[n][co] + patches[n] * tap

    for n in range(Nb):
        for co in range(Cout):
            o_ref[n, co] = accs[n][co]


def _split_batch_across_cores():
    # v7x has 2 TensorCores/chip -> shard the batch axis across them.  On
    # single-TC chips (v5e/v6e) keep a single grid step (extra steps only add
    # per-step overhead on a ~1 us problem).
    try:
        kind = jax.devices()[0].device_kind.lower()
    except Exception:
        return False
    return ("v7" in kind) or ("7x" in kind)


def conv2d_3x3_same(x, weight, bias, *, lane_padded_output=False):
    """x: (N, Cin, H, W) f32; weight: (Cout, Cin, 3, 3); bias: (Cout,).

    Returns (N, Cout, H, W), or the raw (N, Cout, H, 128) lane-padded slab when
    lane_padded_output=True (lets a fused consumer skip the slicing copy).
    """
    N, Cin, H, W = x.shape
    Cout = weight.shape[0]
    assert W <= 126, "roll-based taps need wrapped lanes to land on zero/junk columns"
    HP = ((H + 2 + 7) // 8) * 8  # top conv-pad row + data + zero rows, sublane aligned

    # Glue (plain JAX): zero-pad rows/lanes; flatten params for SMEM scalar reads.
    x_pad = jnp.pad(x.astype(jnp.float32),
                    ((0, 0), (0, 0), (1, HP - 1 - H), (0, LANES - W)))
    w_flat = weight.astype(jnp.float32).reshape(-1)   # (Cout*Cin*9,)
    b_flat = bias.astype(jnp.float32)                 # (Cout,)

    if _split_batch_across_cores():
        grid, nb, semantics = (N,), 1, ("parallel",)
    else:
        grid, nb, semantics = (1,), N, ("arbitrary",)

    out_padded = pl.pallas_call(
        _conv3x3_kernel,
        out_shape=jax.ShapeDtypeStruct((N, Cout, H, LANES), jnp.float32),
        grid=grid,
        in_specs=[
            pl.BlockSpec((nb, Cin, HP, LANES), lambda i: (i, 0, 0, 0)),
            pl.BlockSpec(memory_space=pltpu.MemorySpace.SMEM),
            pl.BlockSpec(memory_space=pltpu.MemorySpace.SMEM),
        ],
        out_specs=pl.BlockSpec((nb, Cout, H, LANES), lambda i: (i, 0, 0, 0)),
        compiler_params=pltpu.CompilerParams(dimension_semantics=semantics),
    )(x_pad, w_flat, b_flat)

    if lane_padded_output:
        return out_padded
    return out_padded[:, :, :, :W]


def _init_params(key):
    # Deterministic init mimicking PyTorch Conv2d default (U(+/- 1/sqrt(fan_in)))
    kw_key, kb_key = jax.random.split(key)
    fan_in = 3 * 3 * 3
    bound = 1.0 / (fan_in ** 0.5)
    weight = jax.random.uniform(kw_key, (3, 3, 3, 3), jnp.float32,
                                minval=-bound, maxval=bound)
    bias = jax.random.uniform(kb_key, (3,), jnp.float32,
                              minval=-bound, maxval=bound)
    return weight, bias


if __name__ == "__main__":
    # Small shapes consistent with the module: batch=2, channels=3, spatial=16.
    key = jax.random.PRNGKey(0)
    k_x, k_p = jax.random.split(key)
    x = jax.random.normal(k_x, (2, 3, 16, 16), jnp.float32)
    weight, bias = _init_params(k_p)

    out = conv2d_3x3_same(x, weight, bias)
    out = jax.block_until_ready(out)

    # Sanity check vs. XLA's conv (same semantics as torch Conv2d, NCHW).
    ref = jax.lax.conv_general_dilated(
        x, weight, window_strides=(1, 1), padding=((1, 1), (1, 1)),
        dimension_numbers=("NCHW", "OIHW", "NCHW")) + bias.reshape(1, 3, 1, 1)
    assert out.shape == (2, 3, 16, 16)
    assert jnp.allclose(out, ref, atol=1e-5, rtol=1e-5)

    print("KERNEL_OK")
</pallas_src>

<mosaic_0001>
module attributes {stable_mosaic.version = 11 : i64} {
  func.func @_conv3x3_kernel(%arg0: i32, %arg1: memref<2x3x24x128xf32, #tpu.memory_space<vmem>>, %arg2: memref<81xf32, #tpu.memory_space<smem>>, %arg3: memref<3xf32, #tpu.memory_space<smem>>, %arg4: memref<2x3x16x128xf32, #tpu.memory_space<vmem>>) attributes {dimension_semantics = [#tpu.dimension_semantics<arbitrary>], iteration_bounds = array<i64: 1>, scalar_prefetch = 0 : i64, scratch_operands = 0 : i64, tpu.core_type = #tpu.core_type<tc>, window_params = [{transform_indices = @transform_0, window_bounds = array<i64: 2, 3, 24, 128>}, {transform_indices = @transform_1, window_bounds = array<i64: 81>}, {transform_indices = @transform_2, window_bounds = array<i64: 3>}, {transform_indices = @transform_3, window_bounds = array<i64: 2, 3, 16, 128>}]} {
    %c0 = arith.constant 0 : index
    %0 = memref.load %arg3[%c0] : memref<3xf32, #tpu.memory_space<smem>>
    %1 = vector.broadcast %0 : f32 to vector<16x128xf32>
    %c1 = arith.constant 1 : index
    %2 = memref.load %arg3[%c1] : memref<3xf32, #tpu.memory_space<smem>>
    %3 = vector.broadcast %2 : f32 to vector<16x128xf32>
    %c2 = arith.constant 2 : index
    %4 = memref.load %arg3[%c2] : memref<3xf32, #tpu.memory_space<smem>>
    %5 = vector.broadcast %4 : f32 to vector<16x128xf32>
    %c0_0 = arith.constant 0 : index
    %6 = memref.load %arg3[%c0_0] : memref<3xf32, #tpu.memory_space<smem>>
    %7 = vector.broadcast %6 : f32 to vector<16x128xf32>
    %c1_1 = arith.constant 1 : index
    %8 = memref.load %arg3[%c1_1] : memref<3xf32, #tpu.memory_space<smem>>
    %9 = vector.broadcast %8 : f32 to vector<16x128xf32>
    %c2_2 = arith.constant 2 : index
    %10 = memref.load %arg3[%c2_2] : memref<3xf32, #tpu.memory_space<smem>>
    %11 = vector.broadcast %10 : f32 to vector<16x128xf32>
    %c0_3 = arith.constant 0 : index
    %c0_4 = arith.constant 0 : index
    %c0_5 = arith.constant 0 : index
    %c0_6 = arith.constant 0 : index
    %12 = vector.load %arg1[%c0_3, %c0_4, %c0_5, %c0_6] : memref<2x3x24x128xf32, #tpu.memory_space<vmem>>, vector<1x1x24x128xf32>
    %13 = vector.shape_cast %12 : vector<1x1x24x128xf32> to vector<24x128xf32>
    %c1_7 = arith.constant 1 : index
    %c0_8 = arith.constant 0 : index
    %c0_9 = arith.constant 0 : index
    %c0_10 = arith.constant 0 : index
    %14 = vector.load %arg1[%c1_7, %c0_8, %c0_9, %c0_10] : memref<2x3x24x128xf32, #tpu.memory_space<vmem>>, vector<1x1x24x128xf32>
    %15 = vector.shape_cast %14 : vector<1x1x24x128xf32> to vector<24x128xf32>
    %16 = vector.extract_strided_slice %13 {offsets = [0, 0], sizes = [16, 128], strides = [1, 1]} : vector<24x128xf32> to vector<16x128xf32>
    %17 = vector.extract_strided_slice %15 {offsets = [0, 0], sizes = [16, 128], strides = [1, 1]} : vector<24x128xf32> to vector<16x128xf32>
    %c1_i32 = arith.constant 1 : i32
    %18 = tpu.dynamic_rotate %16 by %c1_i32 dim 1 : vector<16x128xf32>, i32 -> vector<16x128xf32>
    %c1_i32_11 = arith.constant 1 : i32
    %19 = tpu.dynamic_rotate %17 by %c1_i32_11 dim 1 : vector<16x128xf32>, i32 -> vector<16x128xf32>
    %c0_12 = arith.constant 0 : index
    %20 = memref.load %arg2[%c0_12] : memref<81xf32, #tpu.memory_space<smem>>
    %21 = vector.broadcast %20 : f32 to vector<16x128xf32>
    %22 = arith.mulf %18, %21 : vector<16x128xf32>
    %23 = arith.addf %1, %22 : vector<16x128xf32>
    %24 = vector.broadcast %20 : f32 to vector<16x128xf32>
    %25 = arith.mulf %19, %24 : vector<16x128xf32>
    %26 = arith.addf %7, %25 : vector<16x128xf32>
    %c27 = arith.constant 27 : index
    %27 = memref.load %arg2[%c27] : memref<81xf32, #tpu.memory_space<smem>>
    %28 = vector.broadcast %27 : f32 to vector<16x128xf32>
    %29 = arith.mulf %18, %28 : vector<16x128xf32>
    %30 = arith.addf %3, %29 : vector<16x128xf32>
    %31 = vector.broadcast %27 : f32 to vector<16x128xf32>
    %32 = arith.mulf %19, %31 : vector<16x128xf32>
    %33 = arith.addf %9, %32 : vector<16x128xf32>
    %c54 = arith.constant 54 : index
    %34 = memref.load %arg2[%c54] : memref<81xf32, #tpu.memory_space<smem>>
    %35 = vector.broadcast %34 : f32 to vector<16x128xf32>
    %36 = arith.mulf %18, %35 : vector<16x128xf32>
    %37 = arith.addf %5, %36 : vector<16x128xf32>
    %38 = vector.broadcast %34 : f32 to vector<16x128xf32>
    %39 = arith.mulf %19, %38 : vector<16x128xf32>
    %40 = arith.addf %11, %39 : vector<16x128xf32>
    %c1_13 = arith.constant 1 : index
    %41 = memref.load %arg2[%c1_13] : memref<81xf32, #tpu.memory_space<smem>>
    %42 = vector.broadcast %41 : f32 to vector<16x128xf32>
    %43 = arith.mulf %16, %42 : vector<16x128xf32>
    %44 = arith.addf %23, %43 : vector<16x128xf32>
    %45 = vector.broadcast %41 : f32 to vector<16x128xf32>
    %46 = arith.mulf %17, %45 : vector<16x128xf32>
    %47 = arith.addf %26, %46 : vector<16x128xf32>
    %c28 = arith.constant 28 : index
    %48 = memref.load %arg2[%c28] : memref<81xf32, #tpu.memory_space<smem>>
    %49 = vector.broadcast %48 : f32 to vector<16x128xf32>
    %50 = arith.mulf %16, %49 : vector<16x128xf32>
    %51 = arith.addf %30, %50 : vector<16x128xf32>
    %52 = vector.broadcast %48 : f32 to vector<16x128xf32>
    %53 = arith.mulf %17, %52 : vector<16x128xf32>
    %54 = arith.addf %33, %53 : vector<16x128xf32>
    %c55 = arith.constant 55 : index
    %55 = memref.load %arg2[%c55] : memref<81xf32, #tpu.memory_space<smem>>
    %56 = vector.broadcast %55 : f32 to vector<16x128xf32>
    %57 = arith.mulf %16, %56 : vector<16x128xf32>
    %58 = arith.addf %37, %57 : vector<16x128xf32>
    %59 = vector.broadcast %55 : f32 to vector<16x128xf32>
    %60 = arith.mulf %17, %59 : vector<16x128xf32>
    %61 = arith.addf %40, %60 : vector<16x128xf32>
    %c127_i32 = arith.constant 127 : i32
    %62 = tpu.dynamic_rotate %16 by %c127_i32 dim 1 : vector<16x128xf32>, i32 -> vector<16x128xf32>
    %c127_i32_14 = arith.constant 127 : i32
    %63 = tpu.dynamic_rotate %17 by %c127_i32_14 dim 1 : vector<16x128xf32>, i32 -> vector<16x128xf32>
    %c2_15 = arith.constant 2 : index
    %64 = memref.load %arg2[%c2_15] : memref<81xf32, #tpu.memory_space<smem>>
    %65 = vector.broadcast %64 : f32 to vector<16x128xf32>
    %66 = arith.mulf %62, %65 : vector<16x128xf32>
    %67 = arith.addf %44, %66 : vector<16x128xf32>
    %68 = vector.broadcast %64 : f32 to vector<16x128xf32>
    %69 = arith.mulf %63, %68 : vector<16x128xf32>
    %70 = arith.addf %47, %69 : vector<16x128xf32>
    %c29 = arith.constant 29 : index
    %71 = memref.load %arg2[%c29] : memref<81xf32, #tpu.memory_space<smem>>
    %72 = vector.broadcast %71 : f32 to vector<16x128xf32>
    %73 = arith.mulf %62, %72 : vector<16x128xf32>
    %74 = arith.addf %51, %73 : vector<16x128xf32>
    %75 = vector.broadcast %71 : f32 to vector<16x128xf32>
    %76 = arith.mulf %63, %75 : vector<16x128xf32>
    %77 = arith.addf %54, %76 : vector<16x128xf32>
    %c56 = arith.constant 56 : index
    %78 = memref.load %arg2[%c56] : memref<81xf32, #tpu.memory_space<smem>>
    %79 = vector.broadcast %78 : f32 to vector<16x128xf32>
    %80 = arith.mulf %62, %79 : vector<16x128xf32>
    %81 = arith.addf %58, %80 : vector<16x128xf32>
    %82 = vector.broadcast %78 : f32 to vector<16x128xf32>
    %83 = arith.mulf %63, %82 : vector<16x128xf32>
    %84 = arith.addf %61, %83 : vector<16x128xf32>
    %c23_i32 = arith.constant 23 : i32
    %85 = tpu.dynamic_rotate %13 by %c23_i32 dim 0 : vector<24x128xf32>, i32 -> vector<24x128xf32>
    %86 = vector.extract_strided_slice %85 {offsets = [0, 0], sizes = [16, 128], strides = [1, 1]} : vector<24x128xf32> to vector<16x128xf32>
    %c23_i32_16 = arith.constant 23 : i32
    %87 = tpu.dynamic_rotate %15 by %c23_i32_16 dim 0 : vector<24x128xf32>, i32 -> vector<24x128xf32>
    %88 = vector.extract_strided_slice %87 {offsets = [0, 0], sizes = [16, 128], strides = [1, 1]} : vector<24x128xf32> to vector<16x128xf32>
    %c1_i32_17 = arith.constant 1 : i32
    %89 = tpu.dynamic_rotate %86 by %c1_i32_17 dim 1 : vector<16x128xf32>, i32 -> vector<16x128xf32>
    %c1_i32_18 = arith.constant 1 : i32
    %90 = tpu.dynamic_rotate %88 by %c1_i32_18 dim 1 : vector<16x128xf32>, i32 -> vector<16x128xf32>
    %c3 = arith.constant 3 : index
    %91 = memref.load %arg2[%c3] : memref<81xf32, #tpu.memory_space<smem>>
    %92 = vector.broadcast %91 : f32 to vector<16x128xf32>
    %93 = arith.mulf %89, %92 : vector<16x128xf32>
    %94 = arith.addf %67, %93 : vector<16x128xf32>
    %95 = vector.broadcast %91 : f32 to vector<16x128xf32>
    %96 = arith.mulf %90, %95 : vector<16x128xf32>
    %97 = arith.addf %70, %96 : vector<16x128xf32>
    %c30 = arith.constant 30 : index
    %98 = memref.load %arg2[%c30] : memref<81xf32, #tpu.memory_space<smem>>
    %99 = vector.broadcast %98 : f32 to vector<16x128xf32>
    %100 = arith.mulf %89, %99 : vector<16x128xf32>
    %101 = arith.addf %74, %100 : vector<16x128xf32>
    %102 = vector.broadcast %98 : f32 to vector<16x128xf32>
    %103 = arith.mulf %90, %102 : vector<16x128xf32>
    %104 = arith.addf %77, %103 : vector<16x128xf32>
    %c57 = arith.constant 57 : index
    %105 = memref.load %arg2[%c57] : memref<81xf32, #tpu.memory_space<smem>>
    %106 = vector.broadcast %105 : f32 to vector<16x128xf32>
    %107 = arith.mulf %89, %106 : vector<16x128xf32>
    %108 = arith.addf %81, %107 : vector<16x128xf32>
    %109 = vector.broadcast %105 : f32 to vector<16x128xf32>
    %110 = arith.mulf %90, %109 : vector<16x128xf32>
    %111 = arith.addf %84, %110 : vector<16x128xf32>
    %c4 = arith.constant 4 : index
    %112 = memref.load %arg2[%c4] : memref<81xf32, #tpu.memory_space<smem>>
    %113 = vector.broadcast %112 : f32 to vector<16x128xf32>
    %114 = arith.mulf %86, %113 : vector<16x128xf32>
    %115 = arith.addf %94, %114 : vector<16x128xf32>
    %116 = vector.broadcast %112 : f32 to vector<16x128xf32>
    %117 = arith.mulf %88, %116 : vector<16x128xf32>
    %118 = arith.addf %97, %117 : vector<16x128xf32>
    %c31 = arith.constant 31 : index
    %119 = memref.load %arg2[%c31] : memref<81xf32, #tpu.memory_space<smem>>
    %120 = vector.broadcast %119 : f32 to vector<16x128xf32>
    %121 = arith.mulf %86, %120 : vector<16x128xf32>
    %122 = arith.addf %101, %121 : vector<16x128xf32>
    %123 = vector.broadcast %119 : f32 to vector<16x128xf32>
    %124 = arith.mulf %88, %123 : vector<16x128xf32>
    %125 = arith.addf %104, %124 : vector<16x128xf32>
    %c58 = arith.constant 58 : index
    %126 = memref.load %arg2[%c58] : memref<81xf32, #tpu.memory_space<smem>>
    %127 = vector.broadcast %126 : f32 to vector<16x128xf32>
    %128 = arith.mulf %86, %127 : vector<16x128xf32>
    %129 = arith.addf %108, %128 : vector<16x128xf32>
    %130 = vector.broadcast %126 : f32 to vector<16x128xf32>
    %131 = arith.mulf %88, %130 : vector<16x128xf32>
    %132 = arith.addf %111, %131 : vector<16x128xf32>
    %c127_i32_19 = arith.constant 127 : i32
    %133 = tpu.dynamic_rotate %86 by %c127_i32_19 dim 1 : vector<16x128xf32>, i32 -> vector<16x128xf32>
    %c127_i32_20 = arith.constant 127 : i32
    %134 = tpu.dynamic_rotate %88 by %c127_i32_20 dim 1 : vector<16x128xf32>, i32 -> vector<16x128xf32>
    %c5 = arith.constant 5 : index
    %135 = memref.load %arg2[%c5] : memref<81xf32, #tpu.memory_space<smem>>
    %136 = vector.broadcast %135 : f32 to vector<16x128xf32>
    %137 = arith.mulf %133, %136 : vector<16x128xf32>
    %138 = arith.addf %115, %137 : vector<16x128xf32>
    %139 = vector.broadcast %135 : f32 to vector<16x128xf32>
    %140 = arith.mulf %134, %139 : vector<16x128xf32>
    %141 = arith.addf %118, %140 : vector<16x128xf32>
    %c32 = arith.constant 32 : index
    %142 = memref.load %arg2[%c32] : memref<81xf32, #tpu.memory_space<smem>>
    %143 = vector.broadcast %142 : f32 to vector<16x128xf32>
    %144 = arith.mulf %133, %143 : vector<16x128xf32>
    %145 = arith.addf %122, %144 : vector<16x128xf32>
    %146 = vector.broadcast %142 : f32 to vector<16x128xf32>
    %147 = arith.mulf %134, %146 : vector<16x128xf32>
    %148 = arith.addf %125, %147 : vector<16x128xf32>
    %c59 = arith.constant 59 : index
    %149 = memref.load %arg2[%c59] : memref<81xf32, #tpu.memory_space<smem>>
    %150 = vector.broadcast %149 : f32 to vector<16x128xf32>
    %151 = arith.mulf %133, %150 : vector<16x128xf32>
    %152 = arith.addf %129, %151 : vector<16x128xf32>
    %153 = vector.broadcast %149 : f32 to vector<16x128xf32>
    %154 = arith.mulf %134, %153 : vector<16x128xf32>
    %155 = arith.addf %132, %154 : vector<16x128xf32>
    %c22_i32 = arith.constant 22 : i32
    %156 = tpu.dynamic_rotate %13 by %c22_i32 dim 0 : vector<24x128xf32>, i32 -> vector<24x128xf32>
    %157 = vector.extract_strided_slice %156 {offsets = [0, 0], sizes = [16, 128], strides = [1, 1]} : vector<24x128xf32> to vector<16x128xf32>
    %c22_i32_21 = arith.constant 22 : i32
    %158 = tpu.dynamic_rotate %15 by %c22_i32_21 dim 0 : vector<24x128xf32>, i32 -> vector<24x128xf32>
    %159 = vector.extract_strided_slice %158 {offsets = [0, 0], sizes = [16, 128], strides = [1, 1]} : vector<24x128xf32> to vector<16x128xf32>
    %c1_i32_22 = arith.constant 1 : i32
    %160 = tpu.dynamic_rotate %157 by %c1_i32_22 dim 1 : vector<16x128xf32>, i32 -> vector<16x128xf32>
    %c1_i32_23 = arith.constant 1 : i32
    %161 = tpu.dynamic_rotate %159 by %c1_i32_23 dim 1 : vector<16x128xf32>, i32 -> vector<16x128xf32>
    %c6 = arith.constant 6 : index
    %162 = memref.load %arg2[%c6] : memref<81xf32, #tpu.memory_space<smem>>
    %163 = vector.broadcast %162 : f32 to vector<16x128xf32>
    %164 = arith.mulf %160, %163 : vector<16x128xf32>
    %165 = arith.addf %138, %164 : vector<16x128xf32>
    %166 = vector.broadcast %162 : f32 to vector<16x128xf32>
    %167 = arith.mulf %161, %166 : vector<16x128xf32>
    %168 = arith.addf %141, %167 : vector<16x128xf32>
    %c33 = arith.constant 33 : index
    %169 = memref.load %arg2[%c33] : memref<81xf32, #tpu.memory_space<smem>>
    %170 = vector.broadcast %169 : f32 to vector<16x128xf32>
    %171 = arith.mulf %160, %170 : vector<16x128xf32>
    %172 = arith.addf %145, %171 : vector<16x128xf32>
    %173 = vector.broadcast %169 : f32 to vector<16x128xf32>
    %174 = arith.mulf %161, %173 : vector<16x128xf32>
    %175 = arith.addf %148, %174 : vector<16x128xf32>
    %c60 = arith.constant 60 : index
    %176 = memref.load %arg2[%c60] : memref<81xf32, #tpu.memory_space<smem>>
    %177 = vector.broadcast %176 : f32 to vector<16x128xf32>
    %178 = arith.mulf %160, %177 : vector<16x128xf32>
    %179 = arith.addf %152, %178 : vector<16x128xf32>
    %180 = vector.broadcast %176 : f32 to vector<16x128xf32>
    %181 = arith.mulf %161, %180 : vector<16x128xf32>
    %182 = arith.addf %155, %181 : vector<16x128xf32>
    %c7 = arith.constant 7 : index
    %183 = memref.load %arg2[%c7] : memref<81xf32, #tpu.memory_space<smem>>
    %184 = vector.broadcast %183 : f32 to vector<16x128xf32>
    %185 = arith.mulf %157, %184 : vector<16x128xf32>
    %186 = arith.addf %165, %185 : vector<16x128xf32>
    %187 = vector.broadcast %183 : f32 to vector<16x128xf32>
    %188 = arith.mulf %159, %187 : vector<16x128xf32>
    %189 = arith.addf %168, %188 : vector<16x128xf32>
    %c34 = arith.constant 34 : index
    %190 = memref.load %arg2[%c34] : memref<81xf32, #tpu.memory_space<smem>>
    %191 = vector.broadcast %190 : f32 to vector<16x128xf32>
    %192 = arith.mulf %157, %191 : vector<16x128xf32>
    %193 = arith.addf %172, %192 : vector<16x128xf32>
    %194 = vector.broadcast %190 : f32 to vector<16x128xf32>
    %195 = arith.mulf %159, %194 : vector<16x128xf32>
    %196 = arith.addf %175, %195 : vector<16x128xf32>
    %c61 = arith.constant 61 : index
    %197 = memref.load %arg2[%c61] : memref<81xf32, #tpu.memory_space<smem>>
    %198 = vector.broadcast %197 : f32 to vector<16x128xf32>
    %199 = arith.mulf %157, %198 : vector<16x128xf32>
    %200 = arith.addf %179, %199 : vector<16x128xf32>
    %201 = vector.broadcast %197 : f32 to vector<16x128xf32>
    %202 = arith.mulf %159, %201 : vector<16x128xf32>
    %203 = arith.addf %182, %202 : vector<16x128xf32>
    %c127_i32_24 = arith.constant 127 : i32
    %204 = tpu.dynamic_rotate %157 by %c127_i32_24 dim 1 : vector<16x128xf32>, i32 -> vector<16x128xf32>
    %c127_i32_25 = arith.constant 127 : i32
    %205 = tpu.dynamic_rotate %159 by %c127_i32_25 dim 1 : vector<16x128xf32>, i32 -> vector<16x128xf32>
    %c8 = arith.constant 8 : index
    %206 = memref.load %arg2[%c8] : memref<81xf32, #tpu.memory_space<smem>>
    %207 = vector.broadcast %206 : f32 to vector<16x128xf32>
    %208 = arith.mulf %204, %207 : vector<16x128xf32>
    %209 = arith.addf %186, %208 : vector<16x128xf32>
    %210 = vector.broadcast %206 : f32 to vector<16x128xf32>
    %211 = arith.mulf %205, %210 : vector<16x128xf32>
    %212 = arith.addf %189, %211 : vector<16x128xf32>
    %c35 = arith.constant 35 : index
    %213 = memref.load %arg2[%c35] : memref<81xf32, #tpu.memory_space<smem>>
    %214 = vector.broadcast %213 : f32 to vector<16x128xf32>
    %215 = arith.mulf %204, %214 : vector<16x128xf32>
    %216 = arith.addf %193, %215 : vector<16x128xf32>
    %217 = vector.broadcast %213 : f32 to vector<16x128xf32>
    %218 = arith.mulf %205, %217 : vector<16x128xf32>
    %219 = arith.addf %196, %218 : vector<16x128xf32>
    %c62 = arith.constant 62 : index
    %220 = memref.load %arg2[%c62] : memref<81xf32, #tpu.memory_space<smem>>
    %221 = vector.broadcast %220 : f32 to vector<16x128xf32>
    %222 = arith.mulf %204, %221 : vector<16x128xf32>
    %223 = arith.addf %200, %222 : vector<16x128xf32>
    %224 = vector.broadcast %220 : f32 to vector<16x128xf32>
    %225 = arith.mulf %205, %224 : vector<16x128xf32>
    %226 = arith.addf %203, %225 : vector<16x128xf32>
    %c0_26 = arith.constant 0 : index
    %c1_27 = arith.constant 1 : index
    %c0_28 = arith.constant 0 : index
    %c0_29 = arith.constant 0 : index
    %227 = vector.load %arg1[%c0_26, %c1_27, %c0_28, %c0_29] : memref<2x3x24x128xf32, #tpu.memory_space<vmem>>, vector<1x1x24x128xf32>
    %228 = vector.shape_cast %227 : vector<1x1x24x128xf32> to vector<24x128xf32>
    %c1_30 = arith.constant 1 : index
    %c1_31 = arith.constant 1 : index
    %c0_32 = arith.constant 0 : index
    %c0_33 = arith.constant 0 : index
    %229 = vector.load %arg1[%c1_30, %c1_31, %c0_32, %c0_33] : memref<2x3x24x128xf32, #tpu.memory_space<vmem>>, vector<1x1x24x128xf32>
    %230 = vector.shape_cast %229 : vector<1x1x24x128xf32> to vector<24x128xf32>
    %231 = vector.extract_strided_slice %228 {offsets = [0, 0], sizes = [16, 128], strides = [1, 1]} : vector<24x128xf32> to vector<16x128xf32>
    %232 = vector.extract_strided_slice %230 {offsets = [0, 0], sizes = [16, 128], strides = [1, 1]} : vector<24x128xf32> to vector<16x128xf32>
    %c1_i32_34 = arith.constant 1 : i32
    %233 = tpu.dynamic_rotate %231 by %c1_i32_34 dim 1 : vector<16x128xf32>, i32 -> vector<16x128xf32>
    %c1_i32_35 = arith.constant 1 : i32
    %234 = tpu.dynamic_rotate %232 by %c1_i32_35 dim 1 : vector<16x128xf32>, i32 -> vector<16x128xf32>
    %c9 = arith.constant 9 : index
    %235 = memref.load %arg2[%c9] : memref<81xf32, #tpu.memory_space<smem>>
    %236 = vector.broadcast %235 : f32 to vector<16x128xf32>
    %237 = arith.mulf %233, %236 : vector<16x128xf32>
    %238 = arith.addf %209, %237 : vector<16x128xf32>
    %239 = vector.broadcast %235 : f32 to vector<16x128xf32>
    %240 = arith.mulf %234, %239 : vector<16x128xf32>
    %241 = arith.addf %212, %240 : vector<16x128xf32>
    %c36 = arith.constant 36 : index
    %242 = memref.load %arg2[%c36] : memref<81xf32, #tpu.memory_space<smem>>
    %243 = vector.broadcast %242 : f32 to vector<16x128xf32>
    %244 = arith.mulf %233, %243 : vector<16x128xf32>
    %245 = arith.addf %216, %244 : vector<16x128xf32>
    %246 = vector.broadcast %242 : f32 to vector<16x128xf32>
    %247 = arith.mulf %234, %246 : vector<16x128xf32>
    %248 = arith.addf %219, %247 : vector<16x128xf32>
    %c63 = arith.constant 63 : index
    %249 = memref.load %arg2[%c63] : memref<81xf32, #tpu.memory_space<smem>>
    %250 = vector.broadcast %249 : f32 to vector<16x128xf32>
    %251 = arith.mulf %233, %250 : vector<16x128xf32>
    %252 = arith.addf %223, %251 : vector<16x128xf32>
    %253 = vector.broadcast %249 : f32 to vector<16x128xf32>
    %254 = arith.mulf %234, %253 : vector<16x128xf32>
    %255 = arith.addf %226, %254 : vector<16x128xf32>
    %c10 = arith.constant 10 : index
    %256 = memref.load %arg2[%c10] : memref<81xf32, #tpu.memory_space<smem>>
    %257 = vector.broadcast %256 : f32 to vector<16x128xf32>
    %258 = arith.mulf %231, %257 : vector<16x128xf32>
    %259 = arith.addf %238, %258 : vector<16x128xf32>
    %260 = vector.broadcast %256 : f32 to vector<16x128xf32>
    %261 = arith.mulf %232, %260 : vector<16x128xf32>
    %262 = arith.addf %241, %261 : vector<16x128xf32>
    %c37 = arith.constant 37 : index
    %263 = memref.load %arg2[%c37] : memref<81xf32, #tpu.memory_space<smem>>
    %264 = vector.broadcast %263 : f32 to vector<16x128xf32>
    %265 = arith.mulf %231, %264 : vector<16x128xf32>
    %266 = arith.addf %245, %265 : vector<16x128xf32>
    %267 = vector.broadcast %263 : f32 to vector<16x128xf32>
    %268 = arith.mulf %232, %267 : vector<16x128xf32>
    %269 = arith.addf %248, %268 : vector<16x128xf32>
    %c64 = arith.constant 64 : index
    %270 = memref.load %arg2[%c64] : memref<81xf32, #tpu.memory_space<smem>>
    %271 = vector.broadcast %270 : f32 to vector<16x128xf32>
    %272 = arith.mulf %231, %271 : vector<16x128xf32>
    %273 = arith.addf %252, %272 : vector<16x128xf32>
    %274 = vector.broadcast %270 : f32 to vector<16x128xf32>
    %275 = arith.mulf %232, %274 : vector<16x128xf32>
    %276 = arith.addf %255, %275 : vector<16x128xf32>
    %c127_i32_36 = arith.constant 127 : i32
    %277 = tpu.dynamic_rotate %231 by %c127_i32_36 dim 1 : vector<16x128xf32>, i32 -> vector<16x128xf32>
    %c127_i32_37 = arith.constant 127 : i32
    %278 = tpu.dynamic_rotate %232 by %c127_i32_37 dim 1 : vector<16x128xf32>, i32 -> vector<16x128xf32>
    %c11 = arith.constant 11 : index
    %279 = memref.load %arg2[%c11] : memref<81xf32, #tpu.memory_space<smem>>
    %280 = vector.broadcast %279 : f32 to vector<16x128xf32>
    %281 = arith.mulf %277, %280 : vector<16x128xf32>
    %282 = arith.addf %259, %281 : vector<16x128xf32>
    %283 = vector.broadcast %279 : f32 to vector<16x128xf32>
    %284 = arith.mulf %278, %283 : vector<16x128xf32>
    %285 = arith.addf %262, %284 : vector<16x128xf32>
    %c38 = arith.constant 38 : index
    %286 = memref.load %arg2[%c38] : memref<81xf32, #tpu.memory_space<smem>>
    %287 = vector.broadcast %286 : f32 to vector<16x128xf32>
    %288 = arith.mulf %277, %287 : vector<16x128xf32>
    %289 = arith.addf %266, %288 : vector<16x128xf32>
    %290 = vector.broadcast %286 : f32 to vector<16x128xf32>
    %291 = arith.mulf %278, %290 : vector<16x128xf32>
    %292 = arith.addf %269, %291 : vector<16x128xf32>
    %c65 = arith.constant 65 : index
    %293 = memref.load %arg2[%c65] : memref<81xf32, #tpu.memory_space<smem>>
    %294 = vector.broadcast %293 : f32 to vector<16x128xf32>
    %295 = arith.mulf %277, %294 : vector<16x128xf32>
    %296 = arith.addf %273, %295 : vector<16x128xf32>
    %297 = vector.broadcast %293 : f32 to vector<16x128xf32>
    %298 = arith.mulf %278, %297 : vector<16x128xf32>
    %299 = arith.addf %276, %298 : vector<16x128xf32>
    %c23_i32_38 = arith.constant 23 : i32
    %300 = tpu.dynamic_rotate %228 by %c23_i32_38 dim 0 : vector<24x128xf32>, i32 -> vector<24x128xf32>
    %301 = vector.extract_strided_slice %300 {offsets = [0, 0], sizes = [16, 128], strides = [1, 1]} : vector<24x128xf32> to vector<16x128xf32>
    %c23_i32_39 = arith.constant 23 : i32
    %302 = tpu.dynamic_rotate %230 by %c23_i32_39 dim 0 : vector<24x128xf32>, i32 -> vector<24x128xf32>
    %303 = vector.extract_strided_slice %302 {offsets = [0, 0], sizes = [16, 128], strides = [1, 1]} : vector<24x128xf32> to vector<16x128xf32>
    %c1_i32_40 = arith.constant 1 : i32
    %304 = tpu.dynamic_rotate %301 by %c1_i32_40 dim 1 : vector<16x128xf32>, i32 -> vector<16x128xf32>
    %c1_i32_41 = arith.constant 1 : i32
    %305 = tpu.dynamic_rotate %303 by %c1_i32_41 dim 1 : vector<16x128xf32>, i32 -> vector<16x128xf32>
    %c12 = arith.constant 12 : index
    %306 = memref.load %arg2[%c12] : memref<81xf32, #tpu.memory_space<smem>>
    %307 = vector.broadcast %306 : f32 to vector<16x128xf32>
    %308 = arith.mulf %304, %307 : vector<16x128xf32>
    %309 = arith.addf %282, %308 : vector<16x128xf32>
    %310 = vector.broadcast %306 : f32 to vector<16x128xf32>
    %311 = arith.mulf %305, %310 : vector<16x128xf32>
    %312 = arith.addf %285, %311 : vector<16x128xf32>
    %c39 = arith.constant 39 : index
    %313 = memref.load %arg2[%c39] : memref<81xf32, #tpu.memory_space<smem>>
    %314 = vector.broadcast %313 : f32 to vector<16x128xf32>
    %315 = arith.mulf %304, %314 : vector<16x128xf32>
    %316 = arith.addf %289, %315 : vector<16x128xf32>
    %317 = vector.broadcast %313 : f32 to vector<16x128xf32>
    %318 = arith.mulf %305, %317 : vector<16x128xf32>
    %319 = arith.addf %292, %318 : vector<16x128xf32>
    %c66 = arith.constant 66 : index
    %320 = memref.load %arg2[%c66] : memref<81xf32, #tpu.memory_space<smem>>
    %321 = vector.broadcast %320 : f32 to vector<16x128xf32>
    %322 = arith.mulf %304, %321 : vector<16x128xf32>
    %323 = arith.addf %296, %322 : vector<16x128xf32>
    %324 = vector.broadcast %320 : f32 to vector<16x128xf32>
    %325 = arith.mulf %305, %324 : vector<16x128xf32>
    %326 = arith.addf %299, %325 : vector<16x128xf32>
    %c13 = arith.constant 13 : index
    %327 = memref.load %arg2[%c13] : memref<81xf32, #tpu.memory_space<smem>>
    %328 = vector.broadcast %327 : f32 to vector<16x128xf32>
    %329 = arith.mulf %301, %328 : vector<16x128xf32>
    %330 = arith.addf %309, %329 : vector<16x128xf32>
    %331 = vector.broadcast %327 : f32 to vector<16x128xf32>
    %332 = arith.mulf %303, %331 : vector<16x128xf32>
    %333 = arith.addf %312, %332 : vector<16x128xf32>
    %c40 = arith.constant 40 : index
    %334 = memref.load %arg2[%c40] : memref<81xf32, #tpu.memory_space<smem>>
    %335 = vector.broadcast %334 : f32 to vector<16x128xf32>
    %336 = arith.mulf %301, %335 : vector<16x128xf32>
    %337 = arith.addf %316, %336 : vector<16x128xf32>
    %338 = vector.broadcast %334 : f32 to vector<16x128xf32>
    %339 = arith.mulf %303, %338 : vector<16x128xf32>
    %340 = arith.addf %319, %339 : vector<16x128xf32>
    %c67 = arith.constant 67 : index
    %341 = memref.load %arg2[%c67] : memref<81xf32, #tpu.memory_space<smem>>
    %342 = vector.broadcast %341 : f32 to vector<16x128xf32>
    %343 = arith.mulf %301, %342 : vector<16x128xf32>
    %344 = arith.addf %323, %343 : vector<16x128xf32>
    %345 = vector.broadcast %341 : f32 to vector<16x128xf32>
    %346 = arith.mulf %303, %345 : vector<16x128xf32>
    %347 = arith.addf %326, %346 : vector<16x128xf32>
    %c127_i32_42 = arith.constant 127 : i32
    %348 = tpu.dynamic_rotate %301 by %c127_i32_42 dim 1 : vector<16x128xf32>, i32 -> vector<16x128xf32>
    %c127_i32_43 = arith.constant 127 : i32
    %349 = tpu.dynamic_rotate %303 by %c127_i32_43 dim 1 : vector<16x128xf32>, i32 -> vector<16x128xf32>
    %c14 = arith.constant 14 : index
    %350 = memref.load %arg2[%c14] : memref<81xf32, #tpu.memory_space<smem>>
    %351 = vector.broadcast %350 : f32 to vector<16x128xf32>
    %352 = arith.mulf %348, %351 : vector<16x128xf32>
    %353 = arith.addf %330, %352 : vector<16x128xf32>
    %354 = vector.broadcast %350 : f32 to vector<16x128xf32>
    %355 = arith.mulf %349, %354 : vector<16x128xf32>
    %356 = arith.addf %333, %355 : vector<16x128xf32>
    %c41 = arith.constant 41 : index
    %357 = memref.load %arg2[%c41] : memref<81xf32, #tpu.memory_space<smem>>
    %358 = vector.broadcast %357 : f32 to vector<16x128xf32>
    %359 = arith.mulf %348, %358 : vector<16x128xf32>
    %360 = arith.addf %337, %359 : vector<16x128xf32>
    %361 = vector.broadcast %357 : f32 to vector<16x128xf32>
    %362 = arith.mulf %349, %361 : vector<16x128xf32>
    %363 = arith.addf %340, %362 : vector<16x128xf32>
    %c68 = arith.constant 68 : index
    %364 = memref.load %arg2[%c68] : memref<81xf32, #tpu.memory_space<smem>>
    %365 = vector.broadcast %364 : f32 to vector<16x128xf32>
    %366 = arith.mulf %348, %365 : vector<16x128xf32>
    %367 = arith.addf %344, %366 : vector<16x128xf32>
    %368 = vector.broadcast %364 : f32 to vector<16x128xf32>
    %369 = arith.mulf %349, %368 : vector<16x128xf32>
    %370 = arith.addf %347, %369 : vector<16x128xf32>
    %c22_i32_44 = arith.constant 22 : i32
    %371 = tpu.dynamic_rotate %228 by %c22_i32_44 dim 0 : vector<24x128xf32>, i32 -> vector<24x128xf32>
    %372 = vector.extract_strided_slice %371 {offsets = [0, 0], sizes = [16, 128], strides = [1, 1]} : vector<24x128xf32> to vector<16x128xf32>
    %c22_i32_45 = arith.constant 22 : i32
    %373 = tpu.dynamic_rotate %230 by %c22_i32_45 dim 0 : vector<24x128xf32>, i32 -> vector<24x128xf32>
    %374 = vector.extract_strided_slice %373 {offsets = [0, 0], sizes = [16, 128], strides = [1, 1]} : vector<24x128xf32> to vector<16x128xf32>
    %c1_i32_46 = arith.constant 1 : i32
    %375 = tpu.dynamic_rotate %372 by %c1_i32_46 dim 1 : vector<16x128xf32>, i32 -> vector<16x128xf32>
    %c1_i32_47 = arith.constant 1 : i32
    %376 = tpu.dynamic_rotate %374 by %c1_i32_47 dim 1 : vector<16x128xf32>, i32 -> vector<16x128xf32>
    %c15 = arith.constant 15 : index
    %377 = memref.load %arg2[%c15] : memref<81xf32, #tpu.memory_space<smem>>
    %378 = vector.broadcast %377 : f32 to vector<16x128xf32>
    %379 = arith.mulf %375, %378 : vector<16x128xf32>
    %380 = arith.addf %353, %379 : vector<16x128xf32>
    %381 = vector.broadcast %377 : f32 to vector<16x128xf32>
    %382 = arith.mulf %376, %381 : vector<16x128xf32>
    %383 = arith.addf %356, %382 : vector<16x128xf32>
    %c42 = arith.constant 42 : index
    %384 = memref.load %arg2[%c42] : memref<81xf32, #tpu.memory_space<smem>>
    %385 = vector.broadcast %384 : f32 to vector<16x128xf32>
    %386 = arith.mulf %375, %385 : vector<16x128xf32>
    %387 = arith.addf %360, %386 : vector<16x128xf32>
    %388 = vector.broadcast %384 : f32 to vector<16x128xf32>
    %389 = arith.mulf %376, %388 : vector<16x128xf32>
    %390 = arith.addf %363, %389 : vector<16x128xf32>
    %c69 = arith.constant 69 : index
    %391 = memref.load %arg2[%c69] : memref<81xf32, #tpu.memory_space<smem>>
    %392 = vector.broadcast %391 : f32 to vector<16x128xf32>
    %393 = arith.mulf %375, %392 : vector<16x128xf32>
    %394 = arith.addf %367, %393 : vector<16x128xf32>
    %395 = vector.broadcast %391 : f32 to vector<16x128xf32>
    %396 = arith.mulf %376, %395 : vector<16x128xf32>
    %397 = arith.addf %370, %396 : vector<16x128xf32>
    %c16 = arith.constant 16 : index
    %398 = memref.load %arg2[%c16] : memref<81xf32, #tpu.memory_space<smem>>
    %399 = vector.broadcast %398 : f32 to vector<16x128xf32>
    %400 = arith.mulf %372, %399 : vector<16x128xf32>
    %401 = arith.addf %380, %400 : vector<16x128xf32>
    %402 = vector.broadcast %398 : f32 to vector<16x128xf32>
    %403 = arith.mulf %374, %402 : vector<16x128xf32>
    %404 = arith.addf %383, %403 : vector<16x128xf32>
    %c43 = arith.constant 43 : index
    %405 = memref.load %arg2[%c43] : memref<81xf32, #tpu.memory_space<smem>>
    %406 = vector.broadcast %405 : f32 to vector<16x128xf32>
    %407 = arith.mulf %372, %406 : vector<16x128xf32>
    %408 = arith.addf %387, %407 : vector<16x128xf32>
    %409 = vector.broadcast %405 : f32 to vector<16x128xf32>
    %410 = arith.mulf %374, %409 : vector<16x128xf32>
    %411 = arith.addf %390, %410 : vector<16x128xf32>
    %c70 = arith.constant 70 : index
    %412 = memref.load %arg2[%c70] : memref<81xf32, #tpu.memory_space<smem>>
    %413 = vector.broadcast %412 : f32 to vector<16x128xf32>
    %414 = arith.mulf %372, %413 : vector<16x128xf32>
    %415 = arith.addf %394, %414 : vector<16x128xf32>
    %416 = vector.broadcast %412 : f32 to vector<16x128xf32>
    %417 = arith.mulf %374, %416 : vector<16x128xf32>
    %418 = arith.addf %397, %417 : vector<16x128xf32>
    %c127_i32_48 = arith.constant 127 : i32
    %419 = tpu.dynamic_rotate %372 by %c127_i32_48 dim 1 : vector<16x128xf32>, i32 -> vector<16x128xf32>
    %c127_i32_49 = arith.constant 127 : i32
    %420 = tpu.dynamic_rotate %374 by %c127_i32_49 dim 1 : vector<16x128xf32>, i32 -> vector<16x128xf32>
    %c17 = arith.constant 17 : index
    %421 = memref.load %arg2[%c17] : memref<81xf32, #tpu.memory_space<smem>>
    %422 = vector.broadcast %421 : f32 to vector<16x128xf32>
    %423 = arith.mulf %419, %422 : vector<16x128xf32>
    %424 = arith.addf %401, %423 : vector<16x128xf32>
    %425 = vector.broadcast %421 : f32 to vector<16x128xf32>
    %426 = arith.mulf %420, %425 : vector<16x128xf32>
    %427 = arith.addf %404, %426 : vector<16x128xf32>
    %c44 = arith.constant 44 : index
    %428 = memref.load %arg2[%c44] : memref<81xf32, #tpu.memory_space<smem>>
    %429 = vector.broadcast %428 : f32 to vector<16x128xf32>
    %430 = arith.mulf %419, %429 : vector<16x128xf32>
    %431 = arith.addf %408, %430 : vector<16x128xf32>
    %432 = vector.broadcast %428 : f32 to vector<16x128xf32>
    %433 = arith.mulf %420, %432 : vector<16x128xf32>
    %434 = arith.addf %411, %433 : vector<16x128xf32>
    %c71 = arith.constant 71 : index
    %435 = memref.load %arg2[%c71] : memref<81xf32, #tpu.memory_space<smem>>
    %436 = vector.broadcast %435 : f32 to vector<16x128xf32>
    %437 = arith.mulf %419, %436 : vector<16x128xf32>
    %438 = arith.addf %415, %437 : vector<16x128xf32>
    %439 = vector.broadcast %435 : f32 to vector<16x128xf32>
    %440 = arith.mulf %420, %439 : vector<16x128xf32>
    %441 = arith.addf %418, %440 : vector<16x128xf32>
    %c0_50 = arith.constant 0 : index
    %c2_51 = arith.constant 2 : index
    %c0_52 = arith.constant 0 : index
    %c0_53 = arith.constant 0 : index
    %442 = vector.load %arg1[%c0_50, %c2_51, %c0_52, %c0_53] : memref<2x3x24x128xf32, #tpu.memory_space<vmem>>, vector<1x1x24x128xf32>
    %443 = vector.shape_cast %442 : vector<1x1x24x128xf32> to vector<24x128xf32>
    %c1_54 = arith.constant 1 : index
    %c2_55 = arith.constant 2 : index
    %c0_56 = arith.constant 0 : index
    %c0_57 = arith.constant 0 : index
    %444 = vector.load %arg1[%c1_54, %c2_55, %c0_56, %c0_57] : memref<2x3x24x128xf32, #tpu.memory_space<vmem>>, vector<1x1x24x128xf32>
    %445 = vector.shape_cast %444 : vector<1x1x24x128xf32> to vector<24x128xf32>
    %446 = vector.extract_strided_slice %443 {offsets = [0, 0], sizes = [16, 128], strides = [1, 1]} : vector<24x128xf32> to vector<16x128xf32>
    %447 = vector.extract_strided_slice %445 {offsets = [0, 0], sizes = [16, 128], strides = [1, 1]} : vector<24x128xf32> to vector<16x128xf32>
    %c1_i32_58 = arith.constant 1 : i32
    %448 = tpu.dynamic_rotate %446 by %c1_i32_58 dim 1 : vector<16x128xf32>, i32 -> vector<16x128xf32>
    %c1_i32_59 = arith.constant 1 : i32
    %449 = tpu.dynamic_rotate %447 by %c1_i32_59 dim 1 : vector<16x128xf32>, i32 -> vector<16x128xf32>
    %c18 = arith.constant 18 : index
    %450 = memref.load %arg2[%c18] : memref<81xf32, #tpu.memory_space<smem>>
    %451 = vector.broadcast %450 : f32 to vector<16x128xf32>
    %452 = arith.mulf %448, %451 : vector<16x128xf32>
    %453 = arith.addf %424, %452 : vector<16x128xf32>
    %454 = vector.broadcast %450 : f32 to vector<16x128xf32>
    %455 = arith.mulf %449, %454 : vector<16x128xf32>
    %456 = arith.addf %427, %455 : vector<16x128xf32>
    %c45 = arith.constant 45 : index
    %457 = memref.load %arg2[%c45] : memref<81xf32, #tpu.memory_space<smem>>
    %458 = vector.broadcast %457 : f32 to vector<16x128xf32>
    %459 = arith.mulf %448, %458 : vector<16x128xf32>
    %460 = arith.addf %431, %459 : vector<16x128xf32>
    %461 = vector.broadcast %457 : f32 to vector<16x128xf32>
    %462 = arith.mulf %449, %461 : vector<16x128xf32>
    %463 = arith.addf %434, %462 : vector<16x128xf32>
    %c72 = arith.constant 72 : index
    %464 = memref.load %arg2[%c72] : memref<81xf32, #tpu.memory_space<smem>>
    %465 = vector.broadcast %464 : f32 to vector<16x128xf32>
    %466 = arith.mulf %448, %465 : vector<16x128xf32>
    %467 = arith.addf %438, %466 : vector<16x128xf32>
    %468 = vector.broadcast %464 : f32 to vector<16x128xf32>
    %469 = arith.mulf %449, %468 : vector<16x128xf32>
    %470 = arith.addf %441, %469 : vector<16x128xf32>
    %c19 = arith.constant 19 : index
    %471 = memref.load %arg2[%c19] : memref<81xf32, #tpu.memory_space<smem>>
    %472 = vector.broadcast %471 : f32 to vector<16x128xf32>
    %473 = arith.mulf %446, %472 : vector<16x128xf32>
    %474 = arith.addf %453, %473 : vector<16x128xf32>
    %475 = vector.broadcast %471 : f32 to vector<16x128xf32>
    %476 = arith.mulf %447, %475 : vector<16x128xf32>
    %477 = arith.addf %456, %476 : vector<16x128xf32>
    %c46 = arith.constant 46 : index
    %478 = memref.load %arg2[%c46] : memref<81xf32, #tpu.memory_space<smem>>
    %479 = vector.broadcast %478 : f32 to vector<16x128xf32>
    %480 = arith.mulf %446, %479 : vector<16x128xf32>
    %481 = arith.addf %460, %480 : vector<16x128xf32>
    %482 = vector.broadcast %478 : f32 to vector<16x128xf32>
    %483 = arith.mulf %447, %482 : vector<16x128xf32>
    %484 = arith.addf %463, %483 : vector<16x128xf32>
    %c73 = arith.constant 73 : index
    %485 = memref.load %arg2[%c73] : memref<81xf32, #tpu.memory_space<smem>>
    %486 = vector.broadcast %485 : f32 to vector<16x128xf32>
    %487 = arith.mulf %446, %486 : vector<16x128xf32>
    %488 = arith.addf %467, %487 : vector<16x128xf32>
    %489 = vector.broadcast %485 : f32 to vector<16x128xf32>
    %490 = arith.mulf %447, %489 : vector<16x128xf32>
    %491 = arith.addf %470, %490 : vector<16x128xf32>
    %c127_i32_60 = arith.constant 127 : i32
    %492 = tpu.dynamic_rotate %446 by %c127_i32_60 dim 1 : vector<16x128xf32>, i32 -> vector<16x128xf32>
    %c127_i32_61 = arith.constant 127 : i32
    %493 = tpu.dynamic_rotate %447 by %c127_i32_61 dim 1 : vector<16x128xf32>, i32 -> vector<16x128xf32>
    %c20 = arith.constant 20 : index
    %494 = memref.load %arg2[%c20] : memref<81xf32, #tpu.memory_space<smem>>
    %495 = vector.broadcast %494 : f32 to vector<16x128xf32>
    %496 = arith.mulf %492, %495 : vector<16x128xf32>
    %497 = arith.addf %474, %496 : vector<16x128xf32>
    %498 = vector.broadcast %494 : f32 to vector<16x128xf32>
    %499 = arith.mulf %493, %498 : vector<16x128xf32>
    %500 = arith.addf %477, %499 : vector<16x128xf32>
    %c47 = arith.constant 47 : index
    %501 = memref.load %arg2[%c47] : memref<81xf32, #tpu.memory_space<smem>>
    %502 = vector.broadcast %501 : f32 to vector<16x128xf32>
    %503 = arith.mulf %492, %502 : vector<16x128xf32>
    %504 = arith.addf %481, %503 : vector<16x128xf32>
    %505 = vector.broadcast %501 : f32 to vector<16x128xf32>
    %506 = arith.mulf %493, %505 : vector<16x128xf32>
    %507 = arith.addf %484, %506 : vector<16x128xf32>
    %c74 = arith.constant 74 : index
    %508 = memref.load %arg2[%c74] : memref<81xf32, #tpu.memory_space<smem>>
    %509 = vector.broadcast %508 : f32 to vector<16x128xf32>
    %510 = arith.mulf %492, %509 : vector<16x128xf32>
    %511 = arith.addf %488, %510 : vector<16x128xf32>
    %512 = vector.broadcast %508 : f32 to vector<16x128xf32>
    %513 = arith.mulf %493, %512 : vector<16x128xf32>
    %514 = arith.addf %491, %513 : vector<16x128xf32>
    %c23_i32_62 = arith.constant 23 : i32
    %515 = tpu.dynamic_rotate %443 by %c23_i32_62 dim 0 : vector<24x128xf32>, i32 -> vector<24x128xf32>
    %516 = vector.extract_strided_slice %515 {offsets = [0, 0], sizes = [16, 128], strides = [1, 1]} : vector<24x128xf32> to vector<16x128xf32>
    %c23_i32_63 = arith.constant 23 : i32
    %517 = tpu.dynamic_rotate %445 by %c23_i32_63 dim 0 : vector<24x128xf32>, i32 -> vector<24x128xf32>
    %518 = vector.extract_strided_slice %517 {offsets = [0, 0], sizes = [16, 128], strides = [1, 1]} : vector<24x128xf32> to vector<16x128xf32>
    %c1_i32_64 = arith.constant 1 : i32
    %519 = tpu.dynamic_rotate %516 by %c1_i32_64 dim 1 : vector<16x128xf32>, i32 -> vector<16x128xf32>
    %c1_i32_65 = arith.constant 1 : i32
    %520 = tpu.dynamic_rotate %518 by %c1_i32_65 dim 1 : vector<16x128xf32>, i32 -> vector<16x128xf32>
    %c21 = arith.constant 21 : index
    %521 = memref.load %arg2[%c21] : memref<81xf32, #tpu.memory_space<smem>>
    %522 = vector.broadcast %521 : f32 to vector<16x128xf32>
    %523 = arith.mulf %519, %522 : vector<16x128xf32>
    %524 = arith.addf %497, %523 : vector<16x128xf32>
    %525 = vector.broadcast %521 : f32 to vector<16x128xf32>
    %526 = arith.mulf %520, %525 : vector<16x128xf32>
    %527 = arith.addf %500, %526 : vector<16x128xf32>
    %c48 = arith.constant 48 : index
    %528 = memref.load %arg2[%c48] : memref<81xf32, #tpu.memory_space<smem>>
    %529 = vector.broadcast %528 : f32 to vector<16x128xf32>
    %530 = arith.mulf %519, %529 : vector<16x128xf32>
    %531 = arith.addf %504, %530 : vector<16x128xf32>
    %532 = vector.broadcast %528 : f32 to vector<16x128xf32>
    %533 = arith.mulf %520, %532 : vector<16x128xf32>
    %534 = arith.addf %507, %533 : vector<16x128xf32>
    %c75 = arith.constant 75 : index
    %535 = memref.load %arg2[%c75] : memref<81xf32, #tpu.memory_space<smem>>
    %536 = vector.broadcast %535 : f32 to vector<16x128xf32>
    %537 = arith.mulf %519, %536 : vector<16x128xf32>
    %538 = arith.addf %511, %537 : vector<16x128xf32>
    %539 = vector.broadcast %535 : f32 to vector<16x128xf32>
    %540 = arith.mulf %520, %539 : vector<16x128xf32>
    %541 = arith.addf %514, %540 : vector<16x128xf32>
    %c22 = arith.constant 22 : index
    %542 = memref.load %arg2[%c22] : memref<81xf32, #tpu.memory_space<smem>>
    %543 = vector.broadcast %542 : f32 to vector<16x128xf32>
    %544 = arith.mulf %516, %543 : vector<16x128xf32>
    %545 = arith.addf %524, %544 : vector<16x128xf32>
    %546 = vector.broadcast %542 : f32 to vector<16x128xf32>
    %547 = arith.mulf %518, %546 : vector<16x128xf32>
    %548 = arith.addf %527, %547 : vector<16x128xf32>
    %c49 = arith.constant 49 : index
    %549 = memref.load %arg2[%c49] : memref<81xf32, #tpu.memory_space<smem>>
    %550 = vector.broadcast %549 : f32 to vector<16x128xf32>
    %551 = arith.mulf %516, %550 : vector<16x128xf32>
    %552 = arith.addf %531, %551 : vector<16x128xf32>
    %553 = vector.broadcast %549 : f32 to vector<16x128xf32>
    %554 = arith.mulf %518, %553 : vector<16x128xf32>
    %555 = arith.addf %534, %554 : vector<16x128xf32>
    %c76 = arith.constant 76 : index
    %556 = memref.load %arg2[%c76] : memref<81xf32, #tpu.memory_space<smem>>
    %557 = vector.broadcast %556 : f32 to vector<16x128xf32>
    %558 = arith.mulf %516, %557 : vector<16x128xf32>
    %559 = arith.addf %538, %558 : vector<16x128xf32>
    %560 = vector.broadcast %556 : f32 to vector<16x128xf32>
    %561 = arith.mulf %518, %560 : vector<16x128xf32>
    %562 = arith.addf %541, %561 : vector<16x128xf32>
    %c127_i32_66 = arith.constant 127 : i32
    %563 = tpu.dynamic_rotate %516 by %c127_i32_66 dim 1 : vector<16x128xf32>, i32 -> vector<16x128xf32>
    %c127_i32_67 = arith.constant 127 : i32
    %564 = tpu.dynamic_rotate %518 by %c127_i32_67 dim 1 : vector<16x128xf32>, i32 -> vector<16x128xf32>
    %c23 = arith.constant 23 : index
    %565 = memref.load %arg2[%c23] : memref<81xf32, #tpu.memory_space<smem>>
    %566 = vector.broadcast %565 : f32 to vector<16x128xf32>
    %567 = arith.mulf %563, %566 : vector<16x128xf32>
    %568 = arith.addf %545, %567 : vector<16x128xf32>
    %569 = vector.broadcast %565 : f32 to vector<16x128xf32>
    %570 = arith.mulf %564, %569 : vector<16x128xf32>
    %571 = arith.addf %548, %570 : vector<16x128xf32>
    %c50 = arith.constant 50 : index
    %572 = memref.load %arg2[%c50] : memref<81xf32, #tpu.memory_space<smem>>
    %573 = vector.broadcast %572 : f32 to vector<16x128xf32>
    %574 = arith.mulf %563, %573 : vector<16x128xf32>
    %575 = arith.addf %552, %574 : vector<16x128xf32>
    %576 = vector.broadcast %572 : f32 to vector<16x128xf32>
    %577 = arith.mulf %564, %576 : vector<16x128xf32>
    %578 = arith.addf %555, %577 : vector<16x128xf32>
    %c77 = arith.constant 77 : index
    %579 = memref.load %arg2[%c77] : memref<81xf32, #tpu.memory_space<smem>>
    %580 = vector.broadcast %579 : f32 to vector<16x128xf32>
    %581 = arith.mulf %563, %580 : vector<16x128xf32>
    %582 = arith.addf %559, %581 : vector<16x128xf32>
    %583 = vector.broadcast %579 : f32 to vector<16x128xf32>
    %584 = arith.mulf %564, %583 : vector<16x128xf32>
    %585 = arith.addf %562, %584 : vector<16x128xf32>
    %c22_i32_68 = arith.constant 22 : i32
    %586 = tpu.dynamic_rotate %443 by %c22_i32_68 dim 0 : vector<24x128xf32>, i32 -> vector<24x128xf32>
    %587 = vector.extract_strided_slice %586 {offsets = [0, 0], sizes = [16, 128], strides = [1, 1]} : vector<24x128xf32> to vector<16x128xf32>
    %c22_i32_69 = arith.constant 22 : i32
    %588 = tpu.dynamic_rotate %445 by %c22_i32_69 dim 0 : vector<24x128xf32>, i32 -> vector<24x128xf32>
    %589 = vector.extract_strided_slice %588 {offsets = [0, 0], sizes = [16, 128], strides = [1, 1]} : vector<24x128xf32> to vector<16x128xf32>
    %c1_i32_70 = arith.constant 1 : i32
    %590 = tpu.dynamic_rotate %587 by %c1_i32_70 dim 1 : vector<16x128xf32>, i32 -> vector<16x128xf32>
    %c1_i32_71 = arith.constant 1 : i32
    %591 = tpu.dynamic_rotate %589 by %c1_i32_71 dim 1 : vector<16x128xf32>, i32 -> vector<16x128xf32>
    %c24 = arith.constant 24 : index
    %592 = memref.load %arg2[%c24] : memref<81xf32, #tpu.memory_space<smem>>
    %593 = vector.broadcast %592 : f32 to vector<16x128xf32>
    %594 = arith.mulf %590, %593 : vector<16x128xf32>
    %595 = arith.addf %568, %594 : vector<16x128xf32>
    %596 = vector.broadcast %592 : f32 to vector<16x128xf32>
    %597 = arith.mulf %591, %596 : vector<16x128xf32>
    %598 = arith.addf %571, %597 : vector<16x128xf32>
    %c51 = arith.constant 51 : index
    %599 = memref.load %arg2[%c51] : memref<81xf32, #tpu.memory_space<smem>>
    %600 = vector.broadcast %599 : f32 to vector<16x128xf32>
    %601 = arith.mulf %590, %600 : vector<16x128xf32>
    %602 = arith.addf %575, %601 : vector<16x128xf32>
    %603 = vector.broadcast %599 : f32 to vector<16x128xf32>
    %604 = arith.mulf %591, %603 : vector<16x128xf32>
    %605 = arith.addf %578, %604 : vector<16x128xf32>
    %c78 = arith.constant 78 : index
    %606 = memref.load %arg2[%c78] : memref<81xf32, #tpu.memory_space<smem>>
    %607 = vector.broadcast %606 : f32 to vector<16x128xf32>
    %608 = arith.mulf %590, %607 : vector<16x128xf32>
    %609 = arith.addf %582, %608 : vector<16x128xf32>
    %610 = vector.broadcast %606 : f32 to vector<16x128xf32>
    %611 = arith.mulf %591, %610 : vector<16x128xf32>
    %612 = arith.addf %585, %611 : vector<16x128xf32>
    %c25 = arith.constant 25 : index
    %613 = memref.load %arg2[%c25] : memref<81xf32, #tpu.memory_space<smem>>
    %614 = vector.broadcast %613 : f32 to vector<16x128xf32>
    %615 = arith.mulf %587, %614 : vector<16x128xf32>
    %616 = arith.addf %595, %615 : vector<16x128xf32>
    %617 = vector.broadcast %613 : f32 to vector<16x128xf32>
    %618 = arith.mulf %589, %617 : vector<16x128xf32>
    %619 = arith.addf %598, %618 : vector<16x128xf32>
    %c52 = arith.constant 52 : index
    %620 = memref.load %arg2[%c52] : memref<81xf32, #tpu.memory_space<smem>>
    %621 = vector.broadcast %620 : f32 to vector<16x128xf32>
    %622 = arith.mulf %587, %621 : vector<16x128xf32>
    %623 = arith.addf %602, %622 : vector<16x128xf32>
    %624 = vector.broadcast %620 : f32 to vector<16x128xf32>
    %625 = arith.mulf %589, %624 : vector<16x128xf32>
    %626 = arith.addf %605, %625 : vector<16x128xf32>
    %c79 = arith.constant 79 : index
    %627 = memref.load %arg2[%c79] : memref<81xf32, #tpu.memory_space<smem>>
    %628 = vector.broadcast %627 : f32 to vector<16x128xf32>
    %629 = arith.mulf %587, %628 : vector<16x128xf32>
    %630 = arith.addf %609, %629 : vector<16x128xf32>
    %631 = vector.broadcast %627 : f32 to vector<16x128xf32>
    %632 = arith.mulf %589, %631 : vector<16x128xf32>
    %633 = arith.addf %612, %632 : vector<16x128xf32>
    %c127_i32_72 = arith.constant 127 : i32
    %634 = tpu.dynamic_rotate %587 by %c127_i32_72 dim 1 : vector<16x128xf32>, i32 -> vector<16x128xf32>
    %c127_i32_73 = arith.constant 127 : i32
    %635 = tpu.dynamic_rotate %589 by %c127_i32_73 dim 1 : vector<16x128xf32>, i32 -> vector<16x128xf32>
    %c26 = arith.constant 26 : index
    %636 = memref.load %arg2[%c26] : memref<81xf32, #tpu.memory_space<smem>>
    %637 = vector.broadcast %636 : f32 to vector<16x128xf32>
    %638 = arith.mulf %634, %637 : vector<16x128xf32>
    %639 = arith.addf %616, %638 : vector<16x128xf32>
    %640 = vector.broadcast %636 : f32 to vector<16x128xf32>
    %641 = arith.mulf %635, %640 : vector<16x128xf32>
    %642 = arith.addf %619, %641 : vector<16x128xf32>
    %c53 = arith.constant 53 : index
    %643 = memref.load %arg2[%c53] : memref<81xf32, #tpu.memory_space<smem>>
    %644 = vector.broadcast %643 : f32 to vector<16x128xf32>
    %645 = arith.mulf %634, %644 : vector<16x128xf32>
    %646 = arith.addf %623, %645 : vector<16x128xf32>
    %647 = vector.broadcast %643 : f32 to vector<16x128xf32>
    %648 = arith.mulf %635, %647 : vector<16x128xf32>
    %649 = arith.addf %626, %648 : vector<16x128xf32>
    %c80 = arith.constant 80 : index
    %650 = memref.load %arg2[%c80] : memref<81xf32, #tpu.memory_space<smem>>
    %651 = vector.broadcast %650 : f32 to vector<16x128xf32>
    %652 = arith.mulf %634, %651 : vector<16x128xf32>
    %653 = arith.addf %630, %652 : vector<16x128xf32>
    %654 = vector.broadcast %650 : f32 to vector<16x128xf32>
    %655 = arith.mulf %635, %654 : vector<16x128xf32>
    %656 = arith.addf %633, %655 : vector<16x128xf32>
    %c0_74 = arith.constant 0 : index
    %c0_75 = arith.constant 0 : index
    %c0_76 = arith.constant 0 : index
    %c0_77 = arith.constant 0 : index
    %657 = vector.load %arg4[%c0_74, %c0_75, %c0_76, %c0_77] : memref<2x3x16x128xf32, #tpu.memory_space<vmem>>, vector<1x1x16x128xf32>
    %658 = vector.shape_cast %657 : vector<1x1x16x128xf32> to vector<16x128xf32>
    %659 = vector.shape_cast %639 : vector<16x128xf32> to vector<1x1x16x128xf32>
    tpu.vector_store %arg4[%c0_74, %c0_75, %c0_76, %c0_77], %659 {strides = array<i32>} : memref<2x3x16x128xf32, #tpu.memory_space<vmem>>, vector<1x1x16x128xf32>,
    %c0_78 = arith.constant 0 : index
    %c1_79 = arith.constant 1 : index
    %c0_80 = arith.constant 0 : index
    %c0_81 = arith.constant 0 : index
    %660 = vector.load %arg4[%c0_78, %c1_79, %c0_80, %c0_81] : memref<2x3x16x128xf32, #tpu.memory_space<vmem>>, vector<1x1x16x128xf32>
    %661 = vector.shape_cast %660 : vector<1x1x16x128xf32> to vector<16x128xf32>
    %662 = vector.shape_cast %646 : vector<16x128xf32> to vector<1x1x16x128xf32>
    tpu.vector_store %arg4[%c0_78, %c1_79, %c0_80, %c0_81], %662 {strides = array<i32>} : memref<2x3x16x128xf32, #tpu.memory_space<vmem>>, vector<1x1x16x128xf32>,
    %c0_82 = arith.constant 0 : index
    %c2_83 = arith.constant 2 : index
    %c0_84 = arith.constant 0 : index
    %c0_85 = arith.constant 0 : index
    %663 = vector.load %arg4[%c0_82, %c2_83, %c0_84, %c0_85] : memref<2x3x16x128xf32, #tpu.memory_space<vmem>>, vector<1x1x16x128xf32>
    %664 = vector.shape_cast %663 : vector<1x1x16x128xf32> to vector<16x128xf32>
    %665 = vector.shape_cast %653 : vector<16x128xf32> to vector<1x1x16x128xf32>
    tpu.vector_store %arg4[%c0_82, %c2_83, %c0_84, %c0_85], %665 {strides = array<i32>} : memref<2x3x16x128xf32, #tpu.memory_space<vmem>>, vector<1x1x16x128xf32>,
    %c1_86 = arith.constant 1 : index
    %c0_87 = arith.constant 0 : index
    %c0_88 = arith.constant 0 : index
    %c0_89 = arith.constant 0 : index
    %666 = vector.load %arg4[%c1_86, %c0_87, %c0_88, %c0_89] : memref<2x3x16x128xf32, #tpu.memory_space<vmem>>, vector<1x1x16x128xf32>
    %667 = vector.shape_cast %666 : vector<1x1x16x128xf32> to vector<16x128xf32>
    %668 = vector.shape_cast %642 : vector<16x128xf32> to vector<1x1x16x128xf32>
    tpu.vector_store %arg4[%c1_86, %c0_87, %c0_88, %c0_89], %668 {strides = array<i32>} : memref<2x3x16x128xf32, #tpu.memory_space<vmem>>, vector<1x1x16x128xf32>,
    %c1_90 = arith.constant 1 : index
    %c1_91 = arith.constant 1 : index
    %c0_92 = arith.constant 0 : index
    %c0_93 = arith.constant 0 : index
    %669 = vector.load %arg4[%c1_90, %c1_91, %c0_92, %c0_93] : memref<2x3x16x128xf32, #tpu.memory_space<vmem>>, vector<1x1x16x128xf32>
    %670 = vector.shape_cast %669 : vector<1x1x16x128xf32> to vector<16x128xf32>
    %671 = vector.shape_cast %649 : vector<16x128xf32> to vector<1x1x16x128xf32>
    tpu.vector_store %arg4[%c1_90, %c1_91, %c0_92, %c0_93], %671 {strides = array<i32>} : memref<2x3x16x128xf32, #tpu.memory_space<vmem>>, vector<1x1x16x128xf32>,
    %c1_94 = arith.constant 1 : index
    %c2_95 = arith.constant 2 : index
    %c0_96 = arith.constant 0 : index
    %c0_97 = arith.constant 0 : index
    %672 = vector.load %arg4[%c1_94, %c2_95, %c0_96, %c0_97] : memref<2x3x16x128xf32, #tpu.memory_space<vmem>>, vector<1x1x16x128xf32>
    %673 = vector.shape_cast %672 : vector<1x1x16x128xf32> to vector<16x128xf32>
    %674 = vector.shape_cast %656 : vector<16x128xf32> to vector<1x1x16x128xf32>
    tpu.vector_store %arg4[%c1_94, %c2_95, %c0_96, %c0_97], %674 {strides = array<i32>} : memref<2x3x16x128xf32, #tpu.memory_space<vmem>>, vector<1x1x16x128xf32>,
    return
  }
  func.func @transform_0(%arg0: i32) -> (i32, i32, i32, i32) {
    %c0_i32 = arith.constant 0 : i32
    %c0_i32_0 = arith.constant 0 : i32
    %c0_i32_1 = arith.constant 0 : i32
    %c0_i32_2 = arith.constant 0 : i32
    return %arg0, %c0_i32, %c0_i32_0, %c0_i32_1 : i32, i32, i32, i32
  }
  func.func @transform_1(%arg0: i32) -> i32 {
    %c0_i32 = arith.constant 0 : i32
    %c0_i32_0 = arith.constant 0 : i32
    return %c0_i32 : i32
  }
  func.func @transform_2(%arg0: i32) -> i32 {
    %c0_i32 = arith.constant 0 : i32
    %c0_i32_0 = arith.constant 0 : i32
    return %c0_i32 : i32
  }
  func.func @transform_3(%arg0: i32) -> (i32, i32, i32, i32) {
    %c0_i32 = arith.constant 0 : i32
    %c0_i32_0 = arith.constant 0 : i32
    %c0_i32_1 = arith.constant 0 : i32
    %c0_i32_2 = arith.constant 0 : i32
    return %arg0, %c0_i32, %c0_i32_0, %c0_i32_1 : i32, i32, i32, i32
  }
}

</mosaic_0001>

<llo_original>
// kernel: tpu_custom_call.1
$region0: #{tpu_custom_call.1}
  #allocation0 [shape = 'u32[]', space=smem, size = 0x4, offset = 0x4, fixed_abs, tag = 'smem constant byte address 0x4 - core index']
  #allocation1 [shape = 'u32[144,128]{1,0:T(1,128)}', space=vmem, size = 0x12000, scoped, tag = 'internal scratch']
  %s0 = inlined_call_operand.hbm [shape: f32[2,3,24,128], index: 0, kind: input, shape index: {}]
  %s1 = inlined_call_operand.vmem [shape: f32[81], index: 1, kind: input, shape index: {}]
  %s2 = inlined_call_operand.vmem [shape: f32[3], index: 2, kind: input, shape index: {}]
  %s3 = inlined_call_operand.hbm [shape: f32[2,3,16,128], index: 3, kind: output, shape index: {}]
  %s4 = sld [smem:[#allocation0]]
  $region34: #{tpu_custom_call.1} parent=0
    _
  %s6 = ssub.s32 1, %s4
  %s7 = scalar_select 0, %s6, %s4
  $region1: #{tpu_custom_call.1} parent=0
    #allocation2 [shape = 'u8[73728]{0}', space=vmem, size = 0x12000, scoped, tag = 'input window, operand 0, single buffered']
    #allocation3 [shape = 's32[1]{0}', space=sflag, size = 0x4, scoped, tag = 'scoped memory for tpu_custom_call.1']
    #allocation4 [shape = 's32[1]{0}', space=sflag, size = 0x4, scoped, tag = 'scoped memory for tpu_custom_call.1']
    #allocation5 [shape = 's32[1]{0}', space=sflag, size = 0x4, scoped, tag = 'scoped memory for tpu_custom_call.1']
    #allocation6 [shape = 'u8[512]{0}', space=smem, size = 0x200, scoped, tag = 'input window, operand 1, single buffered']
    #allocation7 [shape = 'u8[512]{0}', space=smem, size = 0x200, scoped, tag = 'input window, operand 2, single buffered']
    #allocation8 [shape = 's32[1]{0}', space=sflag, size = 0x4, scoped, tag = 'scoped memory for tpu_custom_call.1']
    #allocation9 [shape = 'u8[49152]{0}', space=vmem, size = 0xc000, scoped, tag = 'output window, operand 0, single buffered']
    %8 = vsyncpa [#allocation3], 0
    %9 = vsyncpa [#allocation5], 0
    %10 = vsyncpa [#allocation8], 0
    %11 = vsyncpa [#allocation4], 0
    // Predicated region
    $region2: #{tpu_custom_call.1} parent=1 // pred_check
      _
    $region3: #{tpu_custom_call.1} parent=1 // pred_check_branch
      %13 = sbr.rel (0) target = $region5
    $region4: #{tpu_custom_call.1} parent=1 // pred_region
      %s15 = ssub.s32 2304, 2304
      %16 = vsyncadd [#allocation3], %s15
      %s17 = sshll.u32 [#allocation2], 4
      %s18 = int_to_ptr.vmem [resolvable:$true] %s17
      %23 = dma.hbm_to_vmem [thread:$0]  %s0, 2304, %s18, [#allocation3], 128, 128, 8
    $region5: #{tpu_custom_call.1} parent=1 // pred_fallthru
      _
    // Predicated region
    $region6: #{tpu_custom_call.1} parent=1 // pred_check
      _
    $region7: #{tpu_custom_call.1} parent=1 // pred_check_branch
      %25 = sbr.rel (0) target = $region9
    $region8: #{tpu_custom_call.1} parent=1 // pred_region
      %s27 = ssub.s32 16, 16
      %28 = vsyncadd [#allocation5], %s27
      %s30 = sshll.u32 %s1, 4
      %s31 = int_to_ptr.vmem [resolvable:$true] %s30
      %33 = dma.vmem_to_smem %s31, 16, [#allocation6], [#allocation5]
    $region9: #{tpu_custom_call.1} parent=1 // pred_fallthru
      _
    // Predicated region
    $region10: #{tpu_custom_call.1} parent=1 // pred_check
      _
    $region11: #{tpu_custom_call.1} parent=1 // pred_check_branch
      %35 = sbr.rel (0) target = $region13
    $region12: #{tpu_custom_call.1} parent=1 // pred_region
      %s37 = ssub.s32 16, 16
      %38 = vsyncadd [#allocation8], %s37
      %s40 = sshll.u32 %s2, 4
      %s41 = int_to_ptr.vmem [resolvable:$true] %s40
      %43 = dma.vmem_to_smem %s41, 16, [#allocation7], [#allocation8]
    $region13: #{tpu_custom_call.1} parent=1 // pred_fallthru
      _
    // Predicated region
    $region14: #{tpu_custom_call.1} parent=1 // pred_check
      _
    $region15: #{tpu_custom_call.1} parent=1 // pred_check_branch
      %45 = sbr.rel (0) target = $region17
    $region16: #{tpu_custom_call.1} parent=1 // pred_region
      %46 = dma.done [#allocation3], 2304
    $region17: #{tpu_custom_call.1} parent=1 // pred_fallthru
      _
    // Predicated region
    $region18: #{tpu_custom_call.1} parent=1 // pred_check
      _
    $region19: #{tpu_custom_call.1} parent=1 // pred_check_branch
      %48 = sbr.rel (0) target = $region21
    $region20: #{tpu_custom_call.1} parent=1 // pred_region
      %49 = dma.done [#allocation5], 16
    $region21: #{tpu_custom_call.1} parent=1 // pred_fallthru
      _
    // Predicated region
    $region22: #{tpu_custom_call.1} parent=1 // pred_check
      _
    $region23: #{tpu_custom_call.1} parent=1 // pred_check_branch
      %51 = sbr.rel (0) target = $region25
    $region24: #{tpu_custom_call.1} parent=1 // pred_region
      %52 = dma.done [#allocation8], 16
    $region25: #{tpu_custom_call.1} parent=1 // pred_fallthru
      _
    %53 = sfence
    %s54 = sld [smem:[#allocation7]]
    %v55 = vstv %s54
    %s56 = sld [smem:[#allocation7 + $0x1]]
    %v57 = vstv %s56
    %s58 = sld [smem:[#allocation7 + $0x2]]
    %v59 = vstv %s58
    %v60 = vld [vmem:[#allocation2] sm:$0xff]
    %v61 = vld [vmem:[#allocation2 + $0x8] sm:$0xff]
    %v62 = vld [vmem:[#allocation2 + $0x10] sm:$0xff]
    %s63 = scalar_lea.vmem [#allocation2], 72
    %v64 = vld [vmem:[%s63] sm:$0xff]
    %v65 = vld [vmem:[%s63 + $0x8] sm:$0xff]
    %v66 = vld [vmem:[%s63 + $0x10] sm:$0xff]
    %67 = vrot.lane.b32.xlu0 %v60, 1
    %v68 = vpop.permute.xlu0 %67
    %69 = vrot.lane.b32.xlu0 %v61, 1
    %v70 = vpop.permute.xlu0 %69
    %71 = vrot.lane.b32.xlu0 %v64, 1
    %v72 = vpop.permute.xlu0 %71
    %73 = vrot.lane.b32.xlu0 %v65, 1
    %v74 = vpop.permute.xlu0 %73
    %s75 = sld [smem:[#allocation6]]
    %v76 = vstv %s75
    %v77 = vmul.f32 %v68, %v76
    %v78 = vmul.f32 %v70, %v76
    %v79 = vadd.f32 %v55, %v77
    %v80 = vadd.f32 %v55, %v78
    %v81 = vmul.f32 %v72, %v76
    %v82 = vmul.f32 %v74, %v76
    %v83 = vadd.f32 %v55, %v81
    %v84 = vadd.f32 %v55, %v82
    %s85 = sld [smem:[#allocation6 + $0x1b]]
    %v86 = vstv %s85
    %v87 = vmul.f32 %v68, %v86
    %v88 = vmul.f32 %v70, %v86
    %v89 = vadd.f32 %v57, %v87
    %v90 = vadd.f32 %v57, %v88
    %v91 = vmul.f32 %v72, %v86
    %v92 = vmul.f32 %v74, %v86
    %v93 = vadd.f32 %v57, %v91
    %v94 = vadd.f32 %v57, %v92
    %s95 = sld [smem:[#allocation6 + $0x36]]
    %v96 = vstv %s95
    %v97 = vmul.f32 %v68, %v96
    %v98 = vmul.f32 %v70, %v96
    %v99 = vadd.f32 %v59, %v97
    %v100 = vadd.f32 %v59, %v98
    %v101 = vmul.f32 %v72, %v96
    %v102 = vmul.f32 %v74, %v96
    %v103 = vadd.f32 %v59, %v101
    %v104 = vadd.f32 %v59, %v102
    %s105 = sld [smem:[#allocation6 + $0x1]]
    %v106 = vstv %s105
    %v107 = vmul.f32 %v60, %v106
    %v108 = vmul.f32 %v61, %v106
    %v109 = vadd.f32 %v79, %v107
    %v110 = vadd.f32 %v80, %v108
    %v111 = vmul.f32 %v64, %v106
    %v112 = vmul.f32 %v65, %v106
    %v113 = vadd.f32 %v83, %v111
    %v114 = vadd.f32 %v84, %v112
    %s115 = sld [smem:[#allocation6 + $0x1c]]
    %v116 = vstv %s115
    %v117 = vmul.f32 %v60, %v116
    %v118 = vmul.f32 %v61, %v116
    %v119 = vadd.f32 %v89, %v117
    %v120 = vadd.f32 %v90, %v118
    %v121 = vmul.f32 %v64, %v116
    %v122 = vmul.f32 %v65, %v116
    %v123 = vadd.f32 %v93, %v121
    %v124 = vadd.f32 %v94, %v122
    %s125 = sld [smem:[#allocation6 + $0x37]]
    %v126 = vstv %s125
    %v127 = vmul.f32 %v60, %v126
    %v128 = vmul.f32 %v61, %v126
    %v129 = vadd.f32 %v99, %v127
    %v130 = vadd.f32 %v100, %v128
    %v131 = vmul.f32 %v64, %v126
    %v132 = vmul.f32 %v65, %v126
    %v133 = vadd.f32 %v103, %v131
    %v134 = vadd.f32 %v104, %v132
    %135 = vrot.lane.b32.xlu0 %v60, 127
    %v136 = vpop.permute.xlu0 %135
    %137 = vrot.lane.b32.xlu0 %v61, 127
    %v138 = vpop.permute.xlu0 %137
    %139 = vrot.lane.b32.xlu0 %v64, 127
    %v140 = vpop.permute.xlu0 %139
    %141 = vrot.lane.b32.xlu0 %v65, 127
    %v142 = vpop.permute.xlu0 %141
    %s143 = sld [smem:[#allocation6 + $0x2]]
    %v144 = vstv %s143
    %v145 = vmul.f32 %v136, %v144
    %v146 = vmul.f32 %v138, %v144
    %v147 = vadd.f32 %v109, %v145
    %v148 = vadd.f32 %v110, %v146
    %v149 = vmul.f32 %v140, %v144
    %v150 = vmul.f32 %v142, %v144
    %v151 = vadd.f32 %v113, %v149
    %v152 = vadd.f32 %v114, %v150
    %s153 = sld [smem:[#allocation6 + $0x1d]]
    %v154 = vstv %s153
    %v155 = vmul.f32 %v136, %v154
    %v156 = vmul.f32 %v138, %v154
    %v157 = vadd.f32 %v119, %v155
    %v158 = vadd.f32 %v120, %v156
    %v159 = vmul.f32 %v140, %v154
    %v160 = vmul.f32 %v142, %v154
    %v161 = vadd.f32 %v123, %v159
    %v162 = vadd.f32 %v124, %v160
    %s163 = sld [smem:[#allocation6 + $0x38]]
    %v164 = vstv %s163
    %v165 = vmul.f32 %v136, %v164
    %v166 = vmul.f32 %v138, %v164
    %v167 = vadd.f32 %v129, %v165
    %v168 = vadd.f32 %v130, %v166
    %v169 = vmul.f32 %v140, %v164
    %v170 = vmul.f32 %v142, %v164
    %v171 = vadd.f32 %v133, %v169
    %v172 = vadd.f32 %v134, %v170
    %v173 = vrot.slane %v60, 1
    %v174 = vrot.slane %v61, 1
    %v175 = vrot.slane %v62, 1
    %v176 = vlaneseq
    %v177 = vshrl.u32 %v176, 7
    %vm178 = vcmp.lt.s32.totalorder %v177, 7
    %v179 = vsel %vm178, %v174, %v175
    %v180 = vsel %vm178, %v173, %v174
    %v181 = vrot.slane %v64, 1
    %v182 = vrot.slane %v65, 1
    %v183 = vrot.slane %v66, 1
    %v184 = vsel %vm178, %v182, %v183
    %v185 = vsel %vm178, %v181, %v182
    %186 = vrot.lane.b32.xlu0 %v180, 1
    %v187 = vpop.permute.xlu0 %186
    %188 = vrot.lane.b32.xlu0 %v179, 1
    %v189 = vpop.permute.xlu0 %188
    %190 = vrot.lane.b32.xlu0 %v185, 1
    %v191 = vpop.permute.xlu0 %190
    %192 = vrot.lane.b32.xlu0 %v184, 1
    %v193 = vpop.permute.xlu0 %192
    %s194 = sld [smem:[#allocation6 + $0x3]]
    %v195 = vstv %s194
    %v196 = vmul.f32 %v187, %v195
    %v197 = vmul.f32 %v189, %v195
    %v198 = vadd.f32 %v147, %v196
    %v199 = vadd.f32 %v148, %v197
    %v200 = vmul.f32 %v191, %v195
    %v201 = vmul.f32 %v193, %v195
    %v202 = vadd.f32 %v151, %v200
    %v203 = vadd.f32 %v152, %v201
    %s204 = sld [smem:[#allocation6 + $0x1e]]
    %v205 = vstv %s204
    %v206 = vmul.f32 %v187, %v205
    %v207 = vmul.f32 %v189, %v205
    %v208 = vadd.f32 %v157, %v206
    %v209 = vadd.f32 %v158, %v207
    %v210 = vmul.f32 %v191, %v205
    %v211 = vmul.f32 %v193, %v205
    %v212 = vadd.f32 %v161, %v210
    %v213 = vadd.f32 %v162, %v211
    %s214 = sld [smem:[#allocation6 + $0x39]]
    %v215 = vstv %s214
    %v216 = vmul.f32 %v187, %v215
    %v217 = vmul.f32 %v189, %v215
    %v218 = vadd.f32 %v167, %v216
    %v219 = vadd.f32 %v168, %v217
    %v220 = vmul.f32 %v191, %v215
    %v221 = vmul.f32 %v193, %v215
    %v222 = vadd.f32 %v171, %v220
    %v223 = vadd.f32 %v172, %v221
    %s224 = sld [smem:[#allocation6 + $0x4]]
    %v225 = vstv %s224
    %v226 = vmul.f32 %v180, %v225
    %v227 = vmul.f32 %v179, %v225
    %v228 = vadd.f32 %v198, %v226
    %v229 = vadd.f32 %v199, %v227
    %v230 = vmul.f32 %v185, %v225
    %v231 = vmul.f32 %v184, %v225
    %v232 = vadd.f32 %v202, %v230
    %v233 = vadd.f32 %v203, %v231
    %s234 = sld [smem:[#allocation6 + $0x1f]]
    %v235 = vstv %s234
    %v236 = vmul.f32 %v180, %v235
    %v237 = vmul.f32 %v179, %v235
    %v238 = vadd.f32 %v208, %v236
    %v239 = vadd.f32 %v209, %v237
    %v240 = vmul.f32 %v185, %v235
    %v241 = vmul.f32 %v184, %v235
    %v242 = vadd.f32 %v212, %v240
    %v243 = vadd.f32 %v213, %v241
    %s244 = sld [smem:[#allocation6 + $0x3a]]
    %v245 = vstv %s244
    %v246 = vmul.f32 %v180, %v245
    %v247 = vmul.f32 %v179, %v245
    %v248 = vadd.f32 %v218, %v246
    %v249 = vadd.f32 %v219, %v247
    %v250 = vmul.f32 %v185, %v245
    %v251 = vmul.f32 %v184, %v245
    %v252 = vadd.f32 %v222, %v250
    %v253 = vadd.f32 %v223, %v251
    %254 = vrot.lane.b32.xlu0 %v180, 127
    %v255 = vpop.permute.xlu0 %254
    %256 = vrot.lane.b32.xlu0 %v179, 127
    %v257 = vpop.permute.xlu0 %256
    %258 = vrot.lane.b32.xlu0 %v185, 127
    %v259 = vpop.permute.xlu0 %258
    %260 = vrot.lane.b32.xlu0 %v184, 127
    %v261 = vpop.permute.xlu0 %260
    %s262 = sld [smem:[#allocation6 + $0x5]]
    %v263 = vstv %s262
    %v264 = vmul.f32 %v255, %v263
    %v265 = vmul.f32 %v257, %v263
    %v266 = vadd.f32 %v228, %v264
    %v267 = vadd.f32 %v229, %v265
    %v268 = vmul.f32 %v259, %v263
    %v269 = vmul.f32 %v261, %v263
    %v270 = vadd.f32 %v232, %v268
    %v271 = vadd.f32 %v233, %v269
    %s272 = sld [smem:[#allocation6 + $0x20]]
    %v273 = vstv %s272
    %v274 = vmul.f32 %v255, %v273
    %v275 = vmul.f32 %v257, %v273
    %v276 = vadd.f32 %v238, %v274
    %v277 = vadd.f32 %v239, %v275
    %v278 = vmul.f32 %v259, %v273
    %v279 = vmul.f32 %v261, %v273
    %v280 = vadd.f32 %v242, %v278
    %v281 = vadd.f32 %v243, %v279
    %s282 = sld [smem:[#allocation6 + $0x3b]]
    %v283 = vstv %s282
    %v284 = vmul.f32 %v255, %v283
    %v285 = vmul.f32 %v257, %v283
    %v286 = vadd.f32 %v248, %v284
    %v287 = vadd.f32 %v249, %v285
    %v288 = vmul.f32 %v259, %v283
    %v289 = vmul.f32 %v261, %v283
    %v290 = vadd.f32 %v252, %v288
    %v291 = vadd.f32 %v253, %v289
    %v292 = vrot.slane %v60, 2
    %v293 = vrot.slane %v61, 2
    %v294 = vrot.slane %v62, 2
    %vm295 = vcmp.lt.s32.totalorder %v177, 6
    %v296 = vsel %vm295, %v293, %v294
    %v297 = vsel %vm295, %v292, %v293
    %v298 = vrot.slane %v64, 2
    %v299 = vrot.slane %v65, 2
    %v300 = vrot.slane %v66, 2
    %v301 = vsel %vm295, %v299, %v300
    %v302 = vsel %vm295, %v298, %v299
    %303 = vrot.lane.b32.xlu0 %v297, 1
    %v304 = vpop.permute.xlu0 %303
    %305 = vrot.lane.b32.xlu0 %v296, 1
    %v306 = vpop.permute.xlu0 %305
    %307 = vrot.lane.b32.xlu0 %v302, 1
    %v308 = vpop.permute.xlu0 %307
    %309 = vrot.lane.b32.xlu0 %v301, 1
    %v310 = vpop.permute.xlu0 %309
    %s311 = sld [smem:[#allocation6 + $0x6]]
    %v312 = vstv %s311
    %v313 = vmul.f32 %v304, %v312
    %v314 = vmul.f32 %v306, %v312
    %v315 = vadd.f32 %v266, %v313
    %v316 = vadd.f32 %v267, %v314
    %v317 = vmul.f32 %v308, %v312
    %v318 = vmul.f32 %v310, %v312
    %v319 = vadd.f32 %v270, %v317
    %v320 = vadd.f32 %v271, %v318
    %s321 = sld [smem:[#allocation6 + $0x21]]
    %v322 = vstv %s321
    %v323 = vmul.f32 %v304, %v322
    %v324 = vmul.f32 %v306, %v322
    %v325 = vadd.f32 %v276, %v323
    %v326 = vadd.f32 %v277, %v324
    %v327 = vmul.f32 %v308, %v322
    %v328 = vmul.f32 %v310, %v322
    %v329 = vadd.f32 %v280, %v327
    %v330 = vadd.f32 %v281, %v328
    %s331 = sld [smem:[#allocation6 + $0x3c]]
    %v332 = vstv %s331
    %v333 = vmul.f32 %v304, %v332
    %v334 = vmul.f32 %v306, %v332
    %v335 = vadd.f32 %v286, %v333
    %v336 = vadd.f32 %v287, %v334
    %v337 = vmul.f32 %v308, %v332
    %v338 = vmul.f32 %v310, %v332
    %v339 = vadd.f32 %v290, %v337
    %v340 = vadd.f32 %v291, %v338
    %s341 = sld [smem:[#allocation6 + $0x7]]
    %v342 = vstv %s341
    %v343 = vmul.f32 %v297, %v342
    %v344 = vmul.f32 %v296, %v342
    %v345 = vadd.f32 %v315, %v343
    %v346 = vadd.f32 %v316, %v344
    %v347 = vmul.f32 %v302, %v342
    %v348 = vmul.f32 %v301, %v342
    %v349 = vadd.f32 %v319, %v347
    %v350 = vadd.f32 %v320, %v348
    %s351 = sld [smem:[#allocation6 + $0x22]]
    %v352 = vstv %s351
    %v353 = vmul.f32 %v297, %v352
    %v354 = vmul.f32 %v296, %v352
    %v355 = vadd.f32 %v325, %v353
    %v356 = vadd.f32 %v326, %v354
    %v357 = vmul.f32 %v302, %v352
    %v358 = vmul.f32 %v301, %v352
    %v359 = vadd.f32 %v329, %v357
    %v360 = vadd.f32 %v330, %v358
    %s361 = sld [smem:[#allocation6 + $0x3d]]
    %v362 = vstv %s361
    %v363 = vmul.f32 %v297, %v362
    %v364 = vmul.f32 %v296, %v362
    %v365 = vadd.f32 %v335, %v363
    %v366 = vadd.f32 %v336, %v364
    %v367 = vmul.f32 %v302, %v362
    %v368 = vmul.f32 %v301, %v362
    %v369 = vadd.f32 %v339, %v367
    %v370 = vadd.f32 %v340, %v368
    %371 = vrot.lane.b32.xlu0 %v297, 127
    %v372 = vpop.permute.xlu0 %371
    %373 = vrot.lane.b32.xlu0 %v296, 127
    %v374 = vpop.permute.xlu0 %373
    %375 = vrot.lane.b32.xlu0 %v302, 127
    %v376 = vpop.permute.xlu0 %375
    %377 = vrot.lane.b32.xlu0 %v301, 127
    %v378 = vpop.permute.xlu0 %377
    %s379 = sld [smem:[#allocation6 + $0x8]]
    %v380 = vstv %s379
    %v381 = vmul.f32 %v372, %v380
    %v382 = vmul.f32 %v374, %v380
    %v383 = vadd.f32 %v345, %v381
    %v384 = vadd.f32 %v346, %v382
    %v385 = vmul.f32 %v376, %v380
    %v386 = vmul.f32 %v378, %v380
    %v387 = vadd.f32 %v349, %v385
    %v388 = vadd.f32 %v350, %v386
    %s389 = sld [smem:[#allocation6 + $0x23]]
    %v390 = vstv %s389
    %v391 = vmul.f32 %v372, %v390
    %v392 = vmul.f32 %v374, %v390
    %v393 = vadd.f32 %v355, %v391
    %v394 = vadd.f32 %v356, %v392
    %v395 = vmul.f32 %v376, %v390
    %v396 = vmul.f32 %v378, %v390
    %v397 = vadd.f32 %v359, %v395
    %v398 = vadd.f32 %v360, %v396
    %s399 = sld [smem:[#allocation6 + $0x3e]]
    %v400 = vstv %s399
    %v401 = vmul.f32 %v372, %v400
    %v402 = vmul.f32 %v374, %v400
    %v403 = vadd.f32 %v365, %v401
    %v404 = vadd.f32 %v366, %v402
    %v405 = vmul.f32 %v376, %v400
    %v406 = vmul.f32 %v378, %v400
    %v407 = vadd.f32 %v369, %v405
    %v408 = vadd.f32 %v370, %v406
    %s409 = scalar_lea.vmem [#allocation2], 24
    %v410 = vld [vmem:[%s409] sm:$0xff]
    %v411 = vld [vmem:[%s409 + $0x8] sm:$0xff]
    %v412 = vld [vmem:[%s409 + $0x10] sm:$0xff]
    %s413 = scalar_lea.vmem [#allocation2], 96
    %v414 = vld [vmem:[%s413] sm:$0xff]
    %v415 = vld [vmem:[%s413 + $0x8] sm:$0xff]
    %v416 = vld [vmem:[%s413 + $0x10] sm:$0xff]
    %417 = vrot.lane.b32.xlu0 %v410, 1
    %v418 = vpop.permute.xlu0 %417
    %419 = vrot.lane.b32.xlu0 %v411, 1
    %v420 = vpop.permute.xlu0 %419
    %421 = vrot.lane.b32.xlu0 %v414, 1
    %v422 = vpop.permute.xlu0 %421
    %423 = vrot.lane.b32.xlu0 %v415, 1
    %v424 = vpop.permute.xlu0 %423
    %s425 = sld [smem:[#allocation6 + $0x9]]
    %v426 = vstv %s425
    %v427 = vmul.f32 %v418, %v426
    %v428 = vmul.f32 %v420, %v426
    %v429 = vadd.f32 %v383, %v427
    %v430 = vadd.f32 %v384, %v428
    %v431 = vmul.f32 %v422, %v426
    %v432 = vmul.f32 %v424, %v426
    %v433 = vadd.f32 %v387, %v431
    %v434 = vadd.f32 %v388, %v432
    %s435 = sld [smem:[#allocation6 + $0x24]]
    %v436 = vstv %s435
    %v437 = vmul.f32 %v418, %v436
    %v438 = vmul.f32 %v420, %v436
    %v439 = vadd.f32 %v393, %v437
    %v440 = vadd.f32 %v394, %v438
    %v441 = vmul.f32 %v422, %v436
    %v442 = vmul.f32 %v424, %v436
    %v443 = vadd.f32 %v397, %v441
    %v444 = vadd.f32 %v398, %v442
    %s445 = sld [smem:[#allocation6 + $0x3f]]
    %v446 = vstv %s445
    %v447 = vmul.f32 %v418, %v446
    %v448 = vmul.f32 %v420, %v446
    %v449 = vadd.f32 %v403, %v447
    %v450 = vadd.f32 %v404, %v448
    %v451 = vmul.f32 %v422, %v446
    %v452 = vmul.f32 %v424, %v446
    %v453 = vadd.f32 %v407, %v451
    %v454 = vadd.f32 %v408, %v452
    %s455 = sld [smem:[#allocation6 + $0xa]]
    %v456 = vstv %s455
    %v457 = vmul.f32 %v410, %v456
    %v458 = vmul.f32 %v411, %v456
    %v459 = vadd.f32 %v429, %v457
    %v460 = vadd.f32 %v430, %v458
    %v461 = vmul.f32 %v414, %v456
    %v462 = vmul.f32 %v415, %v456
    %v463 = vadd.f32 %v433, %v461
    %v464 = vadd.f32 %v434, %v462
    %s465 = sld [smem:[#allocation6 + $0x25]]
    %v466 = vstv %s465
    %v467 = vmul.f32 %v410, %v466
    %v468 = vmul.f32 %v411, %v466
    %v469 = vadd.f32 %v439, %v467
    %v470 = vadd.f32 %v440, %v468
    %v471 = vmul.f32 %v414, %v466
    %v472 = vmul.f32 %v415, %v466
    %v473 = vadd.f32 %v443, %v471
    %v474 = vadd.f32 %v444, %v472
    %s475 = sld [smem:[#allocation6 + $0x40]]
    %v476 = vstv %s475
    %v477 = vmul.f32 %v410, %v476
    %v478 = vmul.f32 %v411, %v476
    %v479 = vadd.f32 %v449, %v477
    %v480 = vadd.f32 %v450, %v478
    %v481 = vmul.f32 %v414, %v476
    %v482 = vmul.f32 %v415, %v476
    %v483 = vadd.f32 %v453, %v481
    %v484 = vadd.f32 %v454, %v482
    %485 = vrot.lane.b32.xlu0 %v410, 127
    %v486 = vpop.permute.xlu0 %485
    %487 = vrot.lane.b32.xlu0 %v411, 127
    %v488 = vpop.permute.xlu0 %487
    %489 = vrot.lane.b32.xlu0 %v414, 127
    %v490 = vpop.permute.xlu0 %489
    %491 = vrot.lane.b32.xlu0 %v415, 127
    %v492 = vpop.permute.xlu0 %491
    %s493 = sld [smem:[#allocation6 + $0xb]]
    %v494 = vstv %s493
    %v495 = vmul.f32 %v486, %v494
    %v496 = vmul.f32 %v488, %v494
    %v497 = vadd.f32 %v459, %v495
    %v498 = vadd.f32 %v460, %v496
    %v499 = vmul.f32 %v490, %v494
    %v500 = vmul.f32 %v492, %v494
    %v501 = vadd.f32 %v463, %v499
    %v502 = vadd.f32 %v464, %v500
    %s503 = sld [smem:[#allocation6 + $0x26]]
    %v504 = vstv %s503
    %v505 = vmul.f32 %v486, %v504
    %v506 = vmul.f32 %v488, %v504
    %v507 = vadd.f32 %v469, %v505
    %v508 = vadd.f32 %v470, %v506
    %v509 = vmul.f32 %v490, %v504
    %v510 = vmul.f32 %v492, %v504
    %v511 = vadd.f32 %v473, %v509
    %v512 = vadd.f32 %v474, %v510
    %s513 = sld [smem:[#allocation6 + $0x41]]
    %v514 = vstv %s513
    %v515 = vmul.f32 %v486, %v514
    %v516 = vmul.f32 %v488, %v514
    %v517 = vadd.f32 %v479, %v515
    %v518 = vadd.f32 %v480, %v516
    %v519 = vmul.f32 %v490, %v514
    %v520 = vmul.f32 %v492, %v514
    %v521 = vadd.f32 %v483, %v519
    %v522 = vadd.f32 %v484, %v520
    %v523 = vrot.slane %v410, 1
    %v524 = vrot.slane %v411, 1
    %v525 = vrot.slane %v412, 1
    %v526 = vsel %vm178, %v524, %v525
    %v527 = vsel %vm178, %v523, %v524
    %v528 = vrot.slane %v414, 1
    %v529 = vrot.slane %v415, 1
    %v530 = vrot.slane %v416, 1
    %v531 = vsel %vm178, %v529, %v530
    %v532 = vsel %vm178, %v528, %v529
    %533 = vrot.lane.b32.xlu0 %v527, 1
    %v534 = vpop.permute.xlu0 %533
    %535 = vrot.lane.b32.xlu0 %v526, 1
    %v536 = vpop.permute.xlu0 %535
    %537 = vrot.lane.b32.xlu0 %v532, 1
    %v538 = vpop.permute.xlu0 %537
    %539 = vrot.lane.b32.xlu0 %v531, 1
    %v540 = vpop.permute.xlu0 %539
    %s541 = sld [smem:[#allocation6 + $0xc]]
    %v542 = vstv %s541
    %v543 = vmul.f32 %v534, %v542
    %v544 = vmul.f32 %v536, %v542
    %v545 = vadd.f32 %v497, %v543
    %v546 = vadd.f32 %v498, %v544
    %v547 = vmul.f32 %v538, %v542
    %v548 = vmul.f32 %v540, %v542
    %v549 = vadd.f32 %v501, %v547
    %v550 = vadd.f32 %v502, %v548
    %s551 = sld [smem:[#allocation6 + $0x27]]
    %v552 = vstv %s551
    %v553 = vmul.f32 %v534, %v552
    %v554 = vmul.f32 %v536, %v552
    %v555 = vadd.f32 %v507, %v553
    %v556 = vadd.f32 %v508, %v554
    %v557 = vmul.f32 %v538, %v552
    %v558 = vmul.f32 %v540, %v552
    %v559 = vadd.f32 %v511, %v557
    %v560 = vadd.f32 %v512, %v558
    %s561 = sld [smem:[#allocation6 + $0x42]]
    %v562 = vstv %s561
    %v563 = vmul.f32 %v534, %v562
    %v564 = vmul.f32 %v536, %v562
    %v565 = vadd.f32 %v517, %v563
    %v566 = vadd.f32 %v518, %v564
    %v567 = vmul.f32 %v538, %v562
    %v568 = vmul.f32 %v540, %v562
    %v569 = vadd.f32 %v521, %v567
    %v570 = vadd.f32 %v522, %v568
    %s571 = sld [smem:[#allocation6 + $0xd]]
    %v572 = vstv %s571
    %v573 = vmul.f32 %v527, %v572
    %v574 = vmul.f32 %v526, %v572
    %v575 = vadd.f32 %v545, %v573
    %v576 = vadd.f32 %v546, %v574
    %v577 = vmul.f32 %v532, %v572
    %v578 = vmul.f32 %v531, %v572
    %v579 = vadd.f32 %v549, %v577
    %v580 = vadd.f32 %v550, %v578
    %s581 = sld [smem:[#allocation6 + $0x28]]
    %v582 = vstv %s581
    %v583 = vmul.f32 %v527, %v582
    %v584 = vmul.f32 %v526, %v582
    %v585 = vadd.f32 %v555, %v583
    %v586 = vadd.f32 %v556, %v584
    %v587 = vmul.f32 %v532, %v582
    %v588 = vmul.f32 %v531, %v582
    %v589 = vadd.f32 %v559, %v587
    %v590 = vadd.f32 %v560, %v588
    %s591 = sld [smem:[#allocation6 + $0x43]]
    %v592 = vstv %s591
    %v593 = vmul.f32 %v527, %v592
    %v594 = vmul.f32 %v526, %v592
    %v595 = vadd.f32 %v565, %v593
    %v596 = vadd.f32 %v566, %v594
    %v597 = vmul.f32 %v532, %v592
    %v598 = vmul.f32 %v531, %v592
    %v599 = vadd.f32 %v569, %v597
    %v600 = vadd.f32 %v570, %v598
    %601 = vrot.lane.b32.xlu0 %v527, 127
    %v602 = vpop.permute.xlu0 %601
    %603 = vrot.lane.b32.xlu0 %v526, 127
    %v604 = vpop.permute.xlu0 %603
    %605 = vrot.lane.b32.xlu0 %v532, 127
    %v606 = vpop.permute.xlu0 %605
    %607 = vrot.lane.b32.xlu0 %v531, 127
    %v608 = vpop.permute.xlu0 %607
    %s609 = sld [smem:[#allocation6 + $0xe]]
    %v610 = vstv %s609
    %v611 = vmul.f32 %v602, %v610
    %v612 = vmul.f32 %v604, %v610
    %v613 = vadd.f32 %v575, %v611
    %v614 = vadd.f32 %v576, %v612
    %v615 = vmul.f32 %v606, %v610
    %v616 = vmul.f32 %v608, %v610
    %v617 = vadd.f32 %v579, %v615
    %v618 = vadd.f32 %v580, %v616
    %s619 = sld [smem:[#allocation6 + $0x29]]
    %v620 = vstv %s619
    %v621 = vmul.f32 %v602, %v620
    %v622 = vmul.f32 %v604, %v620
    %v623 = vadd.f32 %v585, %v621
    %v624 = vadd.f32 %v586, %v622
    %v625 = vmul.f32 %v606, %v620
    %v626 = vmul.f32 %v608, %v620
    %v627 = vadd.f32 %v589, %v625
    %v628 = vadd.f32 %v590, %v626
    %s629 = sld [smem:[#allocation6 + $0x44]]
    %v630 = vstv %s629
    %v631 = vmul.f32 %v602, %v630
    %v632 = vmul.f32 %v604, %v630
    %v633 = vadd.f32 %v595, %v631
    %v634 = vadd.f32 %v596, %v632
    %v635 = vmul.f32 %v606, %v630
    %v636 = vmul.f32 %v608, %v630
    %v637 = vadd.f32 %v599, %v635
    %v638 = vadd.f32 %v600, %v636
    %v639 = vrot.slane %v410, 2
    %v640 = vrot.slane %v411, 2
    %v641 = vrot.slane %v412, 2
    %v642 = vsel %vm295, %v640, %v641
    %v643 = vsel %vm295, %v639, %v640
    %v644 = vrot.slane %v414, 2
    %v645 = vrot.slane %v415, 2
    %v646 = vrot.slane %v416, 2
    %v647 = vsel %vm295, %v645, %v646
    %v648 = vsel %vm295, %v644, %v645
    %649 = vrot.lane.b32.xlu0 %v643, 1
    %v650 = vpop.permute.xlu0 %649
    %651 = vrot.lane.b32.xlu0 %v642, 1
    %v652 = vpop.permute.xlu0 %651
    %653 = vrot.lane.b32.xlu0 %v648, 1
    %v654 = vpop.permute.xlu0 %653
    %655 = vrot.lane.b32.xlu0 %v647, 1
    %v656 = vpop.permute.xlu0 %655
    %s657 = sld [smem:[#allocation6 + $0xf]]
    %v658 = vstv %s657
    %v659 = vmul.f32 %v650, %v658
    %v660 = vmul.f32 %v652, %v658
    %v661 = vadd.f32 %v613, %v659
    %v662 = vadd.f32 %v614, %v660
    %v663 = vmul.f32 %v654, %v658
    %v664 = vmul.f32 %v656, %v658
    %v665 = vadd.f32 %v617, %v663
    %v666 = vadd.f32 %v618, %v664
    %s667 = sld [smem:[#allocation6 + $0x2a]]
    %v668 = vstv %s667
    %v669 = vmul.f32 %v650, %v668
    %v670 = vmul.f32 %v652, %v668
    %v671 = vadd.f32 %v623, %v669
    %v672 = vadd.f32 %v624, %v670
    %v673 = vmul.f32 %v654, %v668
    %v674 = vmul.f32 %v656, %v668
    %v675 = vadd.f32 %v627, %v673
    %v676 = vadd.f32 %v628, %v674
    %s677 = sld [smem:[#allocation6 + $0x45]]
    %v678 = vstv %s677
    %v679 = vmul.f32 %v650, %v678
    %v680 = vmul.f32 %v652, %v678
    %v681 = vadd.f32 %v633, %v679
    %v682 = vadd.f32 %v634, %v680
    %v683 = vmul.f32 %v654, %v678
    %v684 = vmul.f32 %v656, %v678
    %v685 = vadd.f32 %v637, %v683
    %v686 = vadd.f32 %v638, %v684
    %s687 = sld [smem:[#allocation6 + $0x10]]
    %v688 = vstv %s687
    %v689 = vmul.f32 %v643, %v688
    %v690 = vmul.f32 %v642, %v688
    %v691 = vadd.f32 %v661, %v689
    %v692 = vadd.f32 %v662, %v690
    %v693 = vmul.f32 %v648, %v688
    %v694 = vmul.f32 %v647, %v688
    %v695 = vadd.f32 %v665, %v693
    %v696 = vadd.f32 %v666, %v694
    %s697 = sld [smem:[#allocation6 + $0x2b]]
    %v698 = vstv %s697
    %v699 = vmul.f32 %v643, %v698
    %v700 = vmul.f32 %v642, %v698
    %v701 = vadd.f32 %v671, %v699
    %v702 = vadd.f32 %v672, %v700
    %v703 = vmul.f32 %v648, %v698
    %v704 = vmul.f32 %v647, %v698
    %v705 = vadd.f32 %v675, %v703
    %v706 = vadd.f32 %v676, %v704
    %s707 = sld [smem:[#allocation6 + $0x46]]
    %v708 = vstv %s707
    %v709 = vmul.f32 %v643, %v708
    %v710 = vmul.f32 %v642, %v708
    %v711 = vadd.f32 %v681, %v709
    %v712 = vadd.f32 %v682, %v710
    %v713 = vmul.f32 %v648, %v708
    %v714 = vmul.f32 %v647, %v708
    %v715 = vadd.f32 %v685, %v713
    %v716 = vadd.f32 %v686, %v714
    %717 = vrot.lane.b32.xlu0 %v643, 127
    %v718 = vpop.permute.xlu0 %717
    %719 = vrot.lane.b32.xlu0 %v642, 127
    %v720 = vpop.permute.xlu0 %719
    %721 = vrot.lane.b32.xlu0 %v648, 127
    %v722 = vpop.permute.xlu0 %721
    %723 = vrot.lane.b32.xlu0 %v647, 127
    %v724 = vpop.permute.xlu0 %723
    %s725 = sld [smem:[#allocation6 + $0x11]]
    %v726 = vstv %s725
    %v727 = vmul.f32 %v718, %v726
    %v728 = vmul.f32 %v720, %v726
    %v729 = vadd.f32 %v691, %v727
    %v730 = vadd.f32 %v692, %v728
    %v731 = vmul.f32 %v722, %v726
    %v732 = vmul.f32 %v724, %v726
    %v733 = vadd.f32 %v695, %v731
    %v734 = vadd.f32 %v696, %v732
    %s735 = sld [smem:[#allocation6 + $0x2c]]
    %v736 = vstv %s735
    %v737 = vmul.f32 %v718, %v736
    %v738 = vmul.f32 %v720, %v736
    %v739 = vadd.f32 %v701, %v737
    %v740 = vadd.f32 %v702, %v738
    %v741 = vmul.f32 %v722, %v736
    %v742 = vmul.f32 %v724, %v736
    %v743 = vadd.f32 %v705, %v741
    %v744 = vadd.f32 %v706, %v742
    %s745 = sld [smem:[#allocation6 + $0x47]]
    %v746 = vstv %s745
    %v747 = vmul.f32 %v718, %v746
    %v748 = vmul.f32 %v720, %v746
    %v749 = vadd.f32 %v711, %v747
    %v750 = vadd.f32 %v712, %v748
    %v751 = vmul.f32 %v722, %v746
    %v752 = vmul.f32 %v724, %v746
    %v753 = vadd.f32 %v715, %v751
    %v754 = vadd.f32 %v716, %v752
    %s755 = scalar_lea.vmem [#allocation2], 48
    %v756 = vld [vmem:[%s755] sm:$0xff]
    %v757 = vld [vmem:[%s755 + $0x8] sm:$0xff]
    %v758 = vld [vmem:[%s755 + $0x10] sm:$0xff]
    %s759 = scalar_lea.vmem [#allocation2], 120
    %v760 = vld [vmem:[%s759] sm:$0xff]
    %v761 = vld [vmem:[%s759 + $0x8] sm:$0xff]
    %v762 = vld [vmem:[%s759 + $0x10] sm:$0xff]
    %763 = vrot.lane.b32.xlu0 %v756, 1
    %v764 = vpop.permute.xlu0 %763
    %765 = vrot.lane.b32.xlu0 %v757, 1
    %v766 = vpop.permute.xlu0 %765
    %767 = vrot.lane.b32.xlu0 %v760, 1
    %v768 = vpop.permute.xlu0 %767
    %769 = vrot.lane.b32.xlu0 %v761, 1
    %v770 = vpop.permute.xlu0 %769
    %s771 = sld [smem:[#allocation6 + $0x12]]
    %v772 = vstv %s771
    %v773 = vmul.f32 %v764, %v772
    %v774 = vmul.f32 %v766, %v772
    %v775 = vadd.f32 %v729, %v773
    %v776 = vadd.f32 %v730, %v774
    %v777 = vmul.f32 %v768, %v772
    %v778 = vmul.f32 %v770, %v772
    %v779 = vadd.f32 %v733, %v777
    %v780 = vadd.f32 %v734, %v778
    %s781 = sld [smem:[#allocation6 + $0x2d]]
    %v782 = vstv %s781
    %v783 = vmul.f32 %v764, %v782
    %v784 = vmul.f32 %v766, %v782
    %v785 = vadd.f32 %v739, %v783
    %v786 = vadd.f32 %v740, %v784
    %v787 = vmul.f32 %v768, %v782
    %v788 = vmul.f32 %v770, %v782
    %v789 = vadd.f32 %v743, %v787
    %v790 = vadd.f32 %v744, %v788
    %s791 = sld [smem:[#allocation6 + $0x48]]
    %v792 = vstv %s791
    %v793 = vmul.f32 %v764, %v792
    %v794 = vmul.f32 %v766, %v792
    %v795 = vadd.f32 %v749, %v793
    %v796 = vadd.f32 %v750, %v794
    %v797 = vmul.f32 %v768, %v792
    %v798 = vmul.f32 %v770, %v792
    %v799 = vadd.f32 %v753, %v797
    %v800 = vadd.f32 %v754, %v798
    %s801 = sld [smem:[#allocation6 + $0x13]]
    %v802 = vstv %s801
    %v803 = vmul.f32 %v756, %v802
    %v804 = vmul.f32 %v757, %v802
    %v805 = vadd.f32 %v775, %v803
    %v806 = vadd.f32 %v776, %v804
    %v807 = vmul.f32 %v760, %v802
    %v808 = vmul.f32 %v761, %v802
    %v809 = vadd.f32 %v779, %v807
    %v810 = vadd.f32 %v780, %v808
    %s811 = sld [smem:[#allocation6 + $0x2e]]
    %v812 = vstv %s811
    %v813 = vmul.f32 %v756, %v812
    %v814 = vmul.f32 %v757, %v812
    %v815 = vadd.f32 %v785, %v813
    %v816 = vadd.f32 %v786, %v814
    %v817 = vmul.f32 %v760, %v812
    %v818 = vmul.f32 %v761, %v812
    %v819 = vadd.f32 %v789, %v817
    %v820 = vadd.f32 %v790, %v818
    %s821 = sld [smem:[#allocation6 + $0x49]]
    %v822 = vstv %s821
    %v823 = vmul.f32 %v756, %v822
    %v824 = vmul.f32 %v757, %v822
    %v825 = vadd.f32 %v795, %v823
    %v826 = vadd.f32 %v796, %v824
    %v827 = vmul.f32 %v760, %v822
    %v828 = vmul.f32 %v761, %v822
    %v829 = vadd.f32 %v799, %v827
    %v830 = vadd.f32 %v800, %v828
    %831 = vrot.lane.b32.xlu0 %v756, 127
    %v832 = vpop.permute.xlu0 %831
    %833 = vrot.lane.b32.xlu0 %v757, 127
    %v834 = vpop.permute.xlu0 %833
    %835 = vrot.lane.b32.xlu0 %v760, 127
    %v836 = vpop.permute.xlu0 %835
    %837 = vrot.lane.b32.xlu0 %v761, 127
    %v838 = vpop.permute.xlu0 %837
    %s839 = sld [smem:[#allocation6 + $0x14]]
    %v840 = vstv %s839
    %v841 = vmul.f32 %v832, %v840
    %v842 = vmul.f32 %v834, %v840
    %v843 = vadd.f32 %v805, %v841
    %v844 = vadd.f32 %v806, %v842
    %v845 = vmul.f32 %v836, %v840
    %v846 = vmul.f32 %v838, %v840
    %v847 = vadd.f32 %v809, %v845
    %v848 = vadd.f32 %v810, %v846
    %s849 = sld [smem:[#allocation6 + $0x2f]]
    %v850 = vstv %s849
    %v851 = vmul.f32 %v832, %v850
    %v852 = vmul.f32 %v834, %v850
    %v853 = vadd.f32 %v815, %v851
    %v854 = vadd.f32 %v816, %v852
    %v855 = vmul.f32 %v836, %v850
    %v856 = vmul.f32 %v838, %v850
    %v857 = vadd.f32 %v819, %v855
    %v858 = vadd.f32 %v820, %v856
    %s859 = sld [smem:[#allocation6 + $0x4a]]
    %v860 = vstv %s859
    %v861 = vmul.f32 %v832, %v860
    %v862 = vmul.f32 %v834, %v860
    %v863 = vadd.f32 %v825, %v861
    %v864 = vadd.f32 %v826, %v862
    %v865 = vmul.f32 %v836, %v860
    %v866 = vmul.f32 %v838, %v860
    %v867 = vadd.f32 %v829, %v865
    %v868 = vadd.f32 %v830, %v866
    %v869 = vrot.slane %v756, 1
    %v870 = vrot.slane %v757, 1
    %v871 = vrot.slane %v758, 1
    %v872 = vsel %vm178, %v870, %v871
    %v873 = vsel %vm178, %v869, %v870
    %v874 = vrot.slane %v760, 1
    %v875 = vrot.slane %v761, 1
    %v876 = vrot.slane %v762, 1
    %v877 = vsel %vm178, %v875, %v876
    %v878 = vsel %vm178, %v874, %v875
    %879 = vrot.lane.b32.xlu0 %v873, 1
    %v880 = vpop.permute.xlu0 %879
    %881 = vrot.lane.b32.xlu0 %v872, 1
    %v882 = vpop.permute.xlu0 %881
    %883 = vrot.lane.b32.xlu0 %v878, 1
    %v884 = vpop.permute.xlu0 %883
    %885 = vrot.lane.b32.xlu0 %v877, 1
    %v886 = vpop.permute.xlu0 %885
    %s887 = sld [smem:[#allocation6 + $0x15]]
    %v888 = vstv %s887
    %v889 = vmul.f32 %v880, %v888
    %v890 = vmul.f32 %v882, %v888
    %v891 = vadd.f32 %v843, %v889
    %v892 = vadd.f32 %v844, %v890
    %v893 = vmul.f32 %v884, %v888
    %v894 = vmul.f32 %v886, %v888
    %v895 = vadd.f32 %v847, %v893
    %v896 = vadd.f32 %v848, %v894
    %s897 = sld [smem:[#allocation6 + $0x30]]
    %v898 = vstv %s897
    %v899 = vmul.f32 %v880, %v898
    %v900 = vmul.f32 %v882, %v898
    %v901 = vadd.f32 %v853, %v899
    %v902 = vadd.f32 %v854, %v900
    %v903 = vmul.f32 %v884, %v898
    %v904 = vmul.f32 %v886, %v898
    %v905 = vadd.f32 %v857, %v903
    %v906 = vadd.f32 %v858, %v904
    %s907 = sld [smem:[#allocation6 + $0x4b]]
    %v908 = vstv %s907
    %v909 = vmul.f32 %v880, %v908
    %v910 = vmul.f32 %v882, %v908
    %v911 = vadd.f32 %v863, %v909
    %v912 = vadd.f32 %v864, %v910
    %v913 = vmul.f32 %v884, %v908
    %v914 = vmul.f32 %v886, %v908
    %v915 = vadd.f32 %v867, %v913
    %v916 = vadd.f32 %v868, %v914
    %s917 = sld [smem:[#allocation6 + $0x16]]
    %v918 = vstv %s917
    %v919 = vmul.f32 %v873, %v918
    %v920 = vmul.f32 %v872, %v918
    %v921 = vadd.f32 %v891, %v919
    %v922 = vadd.f32 %v892, %v920
    %v923 = vmul.f32 %v878, %v918
    %v924 = vmul.f32 %v877, %v918
    %v925 = vadd.f32 %v895, %v923
    %v926 = vadd.f32 %v896, %v924
    %s927 = sld [smem:[#allocation6 + $0x31]]
    %v928 = vstv %s927
    %v929 = vmul.f32 %v873, %v928
    %v930 = vmul.f32 %v872, %v928
    %v931 = vadd.f32 %v901, %v929
    %v932 = vadd.f32 %v902, %v930
    %v933 = vmul.f32 %v878, %v928
    %v934 = vmul.f32 %v877, %v928
    %v935 = vadd.f32 %v905, %v933
    %v936 = vadd.f32 %v906, %v934
    %s937 = sld [smem:[#allocation6 + $0x4c]]
    %v938 = vstv %s937
    %v939 = vmul.f32 %v873, %v938
    %v940 = vmul.f32 %v872, %v938
    %v941 = vadd.f32 %v911, %v939
    %v942 = vadd.f32 %v912, %v940
    %v943 = vmul.f32 %v878, %v938
    %v944 = vmul.f32 %v877, %v938
    %v945 = vadd.f32 %v915, %v943
    %v946 = vadd.f32 %v916, %v944
    %947 = vrot.lane.b32.xlu0 %v873, 127
    %v948 = vpop.permute.xlu0 %947
    %949 = vrot.lane.b32.xlu0 %v872, 127
    %v950 = vpop.permute.xlu0 %949
    %951 = vrot.lane.b32.xlu0 %v878, 127
    %v952 = vpop.permute.xlu0 %951
    %953 = vrot.lane.b32.xlu0 %v877, 127
    %v954 = vpop.permute.xlu0 %953
    %s955 = sld [smem:[#allocation6 + $0x17]]
    %v956 = vstv %s955
    %v957 = vmul.f32 %v948, %v956
    %v958 = vmul.f32 %v950, %v956
    %v959 = vadd.f32 %v921, %v957
    %v960 = vadd.f32 %v922, %v958
    %v961 = vmul.f32 %v952, %v956
    %v962 = vmul.f32 %v954, %v956
    %v963 = vadd.f32 %v925, %v961
    %v964 = vadd.f32 %v926, %v962
    %s965 = sld [smem:[#allocation6 + $0x32]]
    %v966 = vstv %s965
    %v967 = vmul.f32 %v948, %v966
    %v968 = vmul.f32 %v950, %v966
    %v969 = vadd.f32 %v931, %v967
    %v970 = vadd.f32 %v932, %v968
    %v971 = vmul.f32 %v952, %v966
    %v972 = vmul.f32 %v954, %v966
    %v973 = vadd.f32 %v935, %v971
    %v974 = vadd.f32 %v936, %v972
    %s975 = sld [smem:[#allocation6 + $0x4d]]
    %v976 = vstv %s975
    %v977 = vmul.f32 %v948, %v976
    %v978 = vmul.f32 %v950, %v976
    %v979 = vadd.f32 %v941, %v977
    %v980 = vadd.f32 %v942, %v978
    %v981 = vmul.f32 %v952, %v976
    %v982 = vmul.f32 %v954, %v976
    %v983 = vadd.f32 %v945, %v981
    %v984 = vadd.f32 %v946, %v982
    %v985 = vrot.slane %v756, 2
    %v986 = vrot.slane %v757, 2
    %v987 = vrot.slane %v758, 2
    %v988 = vsel %vm295, %v986, %v987
    %v989 = vsel %vm295, %v985, %v986
    %v990 = vrot.slane %v760, 2
    %v991 = vrot.slane %v761, 2
    %v992 = vrot.slane %v762, 2
    %v993 = vsel %vm295, %v991, %v992
    %v994 = vsel %vm295, %v990, %v991
    %995 = vrot.lane.b32.xlu0 %v989, 1
    %v996 = vpop.permute.xlu0 %995
    %997 = vrot.lane.b32.xlu0 %v988, 1
    %v998 = vpop.permute.xlu0 %997
    %999 = vrot.lane.b32.xlu0 %v994, 1
    %v1000 = vpop.permute.xlu0 %999
    %1001 = vrot.lane.b32.xlu0 %v993, 1
    %v1002 = vpop.permute.xlu0 %1001
    %s1003 = sld [smem:[#allocation6 + $0x18]]
    %v1004 = vstv %s1003
    %v1005 = vmul.f32 %v996, %v1004
    %v1006 = vmul.f32 %v998, %v1004
    %v1007 = vadd.f32 %v959, %v1005
    %v1008 = vadd.f32 %v960, %v1006
    %v1009 = vmul.f32 %v1000, %v1004
    %v1010 = vmul.f32 %v1002, %v1004
    %v1011 = vadd.f32 %v963, %v1009
    %v1012 = vadd.f32 %v964, %v1010
    %s1013 = sld [smem:[#allocation6 + $0x33]]
    %v1014 = vstv %s1013
    %v1015 = vmul.f32 %v996, %v1014
    %v1016 = vmul.f32 %v998, %v1014
    %v1017 = vadd.f32 %v969, %v1015
    %v1018 = vadd.f32 %v970, %v1016
    %v1019 = vmul.f32 %v1000, %v1014
    %v1020 = vmul.f32 %v1002, %v1014
    %v1021 = vadd.f32 %v973, %v1019
    %v1022 = vadd.f32 %v974, %v1020
    %s1023 = sld [smem:[#allocation6 + $0x4e]]
    %v1024 = vstv %s1023
    %v1025 = vmul.f32 %v996, %v1024
    %v1026 = vmul.f32 %v998, %v1024
    %v1027 = vadd.f32 %v979, %v1025
    %v1028 = vadd.f32 %v980, %v1026
    %v1029 = vmul.f32 %v1000, %v1024
    %v1030 = vmul.f32 %v1002, %v1024
    %v1031 = vadd.f32 %v983, %v1029
    %v1032 = vadd.f32 %v984, %v1030
    %s1033 = sld [smem:[#allocation6 + $0x19]]
    %v1034 = vstv %s1033
    %v1035 = vmul.f32 %v989, %v1034
    %v1036 = vmul.f32 %v988, %v1034
    %v1037 = vadd.f32 %v1007, %v1035
    %v1038 = vadd.f32 %v1008, %v1036
    %v1039 = vmul.f32 %v994, %v1034
    %v1040 = vmul.f32 %v993, %v1034
    %v1041 = vadd.f32 %v1011, %v1039
    %v1042 = vadd.f32 %v1012, %v1040
    %s1043 = sld [smem:[#allocation6 + $0x34]]
    %v1044 = vstv %s1043
    %v1045 = vmul.f32 %v989, %v1044
    %v1046 = vmul.f32 %v988, %v1044
    %v1047 = vadd.f32 %v1017, %v1045
    %v1048 = vadd.f32 %v1018, %v1046
    %v1049 = vmul.f32 %v994, %v1044
    %v1050 = vmul.f32 %v993, %v1044
    %v1051 = vadd.f32 %v1021, %v1049
    %v1052 = vadd.f32 %v1022, %v1050
    %s1053 = sld [smem:[#allocation6 + $0x4f]]
    %v1054 = vstv %s1053
    %v1055 = vmul.f32 %v989, %v1054
    %v1056 = vmul.f32 %v988, %v1054
    %v1057 = vadd.f32 %v1027, %v1055
    %v1058 = vadd.f32 %v1028, %v1056
    %v1059 = vmul.f32 %v994, %v1054
    %v1060 = vmul.f32 %v993, %v1054
    %v1061 = vadd.f32 %v1031, %v1059
    %v1062 = vadd.f32 %v1032, %v1060
    %1063 = vrot.lane.b32.xlu0 %v989, 127
    %v1064 = vpop.permute.xlu0 %1063
    %1065 = vrot.lane.b32.xlu0 %v988, 127
    %v1066 = vpop.permute.xlu0 %1065
    %1067 = vrot.lane.b32.xlu0 %v994, 127
    %v1068 = vpop.permute.xlu0 %1067
    %1069 = vrot.lane.b32.xlu0 %v993, 127
    %v1070 = vpop.permute.xlu0 %1069
    %s1071 = sld [smem:[#allocation6 + $0x1a]]
    %v1072 = vstv %s1071
    %v1073 = vmul.f32 %v1064, %v1072
    %v1074 = vmul.f32 %v1066, %v1072
    %v1075 = vadd.f32 %v1037, %v1073
    %v1076 = vadd.f32 %v1038, %v1074
    %v1077 = vmul.f32 %v1068, %v1072
    %v1078 = vmul.f32 %v1070, %v1072
    %v1079 = vadd.f32 %v1041, %v1077
    %v1080 = vadd.f32 %v1042, %v1078
    %s1081 = sld [smem:[#allocation6 + $0x35]]
    %v1082 = vstv %s1081
    %v1083 = vmul.f32 %v1064, %v1082
    %v1084 = vmul.f32 %v1066, %v1082
    %v1085 = vadd.f32 %v1047, %v1083
    %v1086 = vadd.f32 %v1048, %v1084
    %v1087 = vmul.f32 %v1068, %v1082
    %v1088 = vmul.f32 %v1070, %v1082
    %v1089 = vadd.f32 %v1051, %v1087
    %v1090 = vadd.f32 %v1052, %v1088
    %s1091 = sld [smem:[#allocation6 + $0x50]]
    %v1092 = vstv %s1091
    %v1093 = vmul.f32 %v1064, %v1092
    %v1094 = vmul.f32 %v1066, %v1092
    %v1095 = vadd.f32 %v1057, %v1093
    %v1096 = vadd.f32 %v1058, %v1094
    %v1097 = vmul.f32 %v1068, %v1092
    %v1098 = vmul.f32 %v1070, %v1092
    %v1099 = vadd.f32 %v1061, %v1097
    %v1100 = vadd.f32 %v1062, %v1098
    %1101 = vst [vmem:[#allocation9] sm:$0xff] %v1075
    %1102 = vst [vmem:[#allocation9 + $0x8] sm:$0xff] %v1076
    %s1103 = scalar_lea.vmem [#allocation9], 16
    %1104 = vst [vmem:[%s1103] sm:$0xff] %v1085
    %1105 = vst [vmem:[%s1103 + $0x8] sm:$0xff] %v1086
    %s1106 = scalar_lea.vmem [#allocation9], 32
    %1107 = vst [vmem:[%s1106] sm:$0xff] %v1095
    %1108 = vst [vmem:[%s1106 + $0x8] sm:$0xff] %v1096
    %s1109 = scalar_lea.vmem [#allocation9], 48
    %1110 = vst [vmem:[%s1109] sm:$0xff] %v1079
    %1111 = vst [vmem:[%s1109 + $0x8] sm:$0xff] %v1080
    %s1112 = scalar_lea.vmem [#allocation9], 64
    %1113 = vst [vmem:[%s1112] sm:$0xff] %v1089
    %1114 = vst [vmem:[%s1112 + $0x8] sm:$0xff] %v1090
    %s1115 = scalar_lea.vmem [#allocation9], 80
    %1116 = vst [vmem:[%s1115] sm:$0xff] %v1099
    %1117 = vst [vmem:[%s1115 + $0x8] sm:$0xff] %v1100
    // Predicated region
    $region26: #{tpu_custom_call.1} parent=1 // pred_check
      _
    $region27: #{tpu_custom_call.1} parent=1 // pred_check_branch
      %1119 = sbr.rel (0) target = $region29
    $region28: #{tpu_custom_call.1} parent=1 // pred_region
      %s1121 = ssub.s32 1536, 1536
      %1122 = vsyncadd [#allocation4], %s1121
      %s1123 = sshll.u32 [#allocation9], 4
      %s1124 = int_to_ptr.vmem [resolvable:$true] %s1123
      %1129 = dma.vmem_to_hbm [thread:$0]  %s1124, 1536, %s3, [#allocation4], 128, 128, 8
    $region29: #{tpu_custom_call.1} parent=1 // pred_fallthru
      _
    // Predicated region
    $region30: #{tpu_custom_call.1} parent=1 // pred_check
      _
    $region31: #{tpu_custom_call.1} parent=1 // pred_check_branch
      %1131 = sbr.rel (0) target = $region33
    $region32: #{tpu_custom_call.1} parent=1 // pred_region
      %1132 = dma.done [#allocation4], 1536
    $region33: #{tpu_custom_call.1} parent=1 // pred_fallthru
      _
    %1133 = vsyncpa [#allocation3], 1
    %1134 = vsyncpa [#allocation4], 1
    %1135 = vsyncpa [#allocation5], 1
    %1136 = vsyncpa [#allocation8], 1

</llo_original>
